<compile_context>
chip_gen: v7x
topology: tpu7x:2x2x1
jax: 0.10.0
libtpu: 0.0.40
codegen_flags: <defaults>
</compile_context>

<pallas_src>
import functools

import jax
import jax.numpy as jnp
from jax.experimental import pallas as pl
from jax.experimental.pallas import tpu as pltpu

_LANE = 128


def _round_up(v, m):
    return (v + m - 1) // m * m


def _mahalanobis_kernel(x_ref, b_ref, t4_ref, out_ref, *, c_pad, precision):
    # x: [TN, D]   b: [D, Cp + D]   t4: [1, Cp]   out: [1, TN]
    x = x_ref[...]
    # Single fused MXU matmul: columns [0, Cp) of B hold (A + A^T) @ means,
    # the remaining D columns hold A; both slices are 128-lane aligned.
    r = jnp.dot(x, b_ref[...], preferred_element_type=jnp.float32,
                precision=precision)                         # [TN, Cp + D]
    term23 = r[:, :c_pad]                                    # x . (A+A^T) mu_c
    xa = r[:, c_pad:]                                        # x @ A
    term1 = jnp.sum(xa * x, axis=1, keepdims=True)           # [TN, 1]  x^T A x
    # Strength-reduced min: padded classes carry +inf in t4 -> ignored.
    qmin = term1 + jnp.min(t4_ref[...] - term23, axis=1, keepdims=True)  # [TN, 1]
    # Narrow pack to the lane-dense output row.  Done as a lane-replicate +
    # one aligned [TN,128] XLU transpose per 128 rows (independent of Cp and
    # hidden under the MXU); Mosaic handles aligned transposes most robustly.
    packed = jnp.broadcast_to(qmin, (qmin.shape[0], _LANE))  # [TN, 128]
    out_ref[...] = packed.T[:1, :]                           # [1, TN]


def _vmem_budget_bytes():
    # ~half of physical VMEM, capped at 48 MiB.
    # (v5e/v6e: 128 MiB physical -> 48 MiB budget; v7x: 64 MiB -> 32 MiB.)
    try:
        cap = int(pltpu.get_tpu_info().vmem_capacity_bytes)
    except Exception:
        cap = 64 << 20
    return min(cap // 2, 48 << 20)


def _vmem_model_bytes(tn, d, c_pad):
    """Approximate VMEM footprint of one TN-row tile (f32 everywhere)."""
    # Residents: constant index_map + pl.Buffered(1) -> single buffer.
    resident = 4 * (d * (c_pad + d) + c_pad)
    # Streamed, double-buffered: x tile + output row.
    streamed = 2 * 4 * tn * (d + _LANE)
    # Kernel-body temporaries: r [TN,Cp+D], (t4-term23) [TN,Cp], xa*x [TN,D],
    # packed [TN,128] -> ~3 full-width f32 live values is a safe upper bound.
    temps = 4 * tn * 3 * (d + c_pad)
    return resident + streamed + temps


def _pick_tile_n(n, d, c_pad, budget):
    fixed = 4 * (d * (c_pad + d) + c_pad) + (4 << 20)      # residents + slack
    per_row = 2 * 4 * (d + _LANE) + 4 * 3 * (d + c_pad)    # streamed + temps
    avail = max(budget - fixed, 0)
    tn = avail // per_row
    # Tile-size curve saturates ~512-1024; keep >= ~8 grid steps when N allows
    # so the DMA pipeline (and both v7x TensorCores) stay busy.
    tn = min(tn, 1024, _round_up(max(pl.cdiv(n, 8), 1), _LANE))
    tn = max(_LANE, (tn // _LANE) * _LANE)
    return int(tn)


def mahalanobis_distance(x, means, alpha, *,
                         precision=jax.lax.Precision.HIGHEST):
    """x: [N, D], means: [D, C], alpha = inv(covar): [D, D] -> [N].

    `precision` is the in-kernel MXU precision.  HIGHEST (default) matches the
    f32 reference (alpha = inv(covar) is precision-sensitive).  For maximum
    throughput pass jax.lax.Precision.DEFAULT, or cast x / B to bf16 outside
    (keeping the f32 accumulate) -- a deliberate accuracy/speed trade-off.
    """
    n, d = x.shape
    d_m, c = means.shape
    assert d == d_m and alpha.shape == (d, d)

    f32 = jnp.float32
    x = x.astype(f32)
    means = means.astype(f32)
    alpha = alpha.astype(f32)

    hi = jax.lax.Precision.HIGHEST
    # Hoisted, tile-invariant class terms (one-off, HIGHEST precision).
    am = jnp.dot(alpha, means, precision=hi)                 # [D, C]  A mu
    m2 = jnp.dot(alpha + alpha.T, means, precision=hi)       # [D, C]  (A+A^T) mu
    t4 = jnp.sum(means * am, axis=0, keepdims=True)          # [1, C]  mu^T A mu

    # Only the class axis is lane-padded; x's feature dim is streamed
    # unpadded so the only HBM-streamed operand carries no zero traffic.
    c_pad = _round_up(c, _LANE)

    # Fused resident operand B = [ m2 (padded to Cp cols) | alpha ].
    b_mat = jnp.zeros((d, c_pad + d), f32)
    b_mat = b_mat.at[:, :c].set(m2)
    b_mat = b_mat.at[:, c_pad:].set(alpha)
    t4_p = jnp.full((1, c_pad), jnp.inf, f32).at[:, :c].set(t4)

    budget = _vmem_budget_bytes()
    tn = _pick_tile_n(n, d, c_pad, budget)
    n_pad = _round_up(n, tn)
    num_tiles = n_pad // tn
    # TODO(synk): for very large D (B no longer VMEM-resident) add a second
    # "arbitrary" grid axis over D-chunks with an f32 VMEM accumulator.

    x_p = jnp.zeros((n_pad, d), f32).at[:n, :].set(x)

    # Tie the compiler VMEM limit to the same per-generation budget used for
    # the tile choice (v7x: 32 MiB of a 64 MiB part; v5e/v6e: 48 MiB).
    vmem_need = _vmem_model_bytes(tn, d, c_pad) + (4 << 20)
    vmem_limit = int(min(max(vmem_need, 16 << 20), budget))

    kernel = functools.partial(_mahalanobis_kernel, c_pad=c_pad,
                               precision=precision)

    out = pl.pallas_call(
        kernel,
        out_shape=jax.ShapeDtypeStruct((num_tiles, 1, tn), f32),
        grid=(num_tiles,),
        in_specs=[
            # x tile: the only HBM-streamed operand (double-buffered).
            # NOTE(v6e): if a trace shows exposed x DMA (wall > compute),
            # deepen with pipeline_mode=pl.Buffered(3).
            pl.BlockSpec((tn, d), lambda i: (i, 0)),
            # Residents with constant index_map: a second pipeline buffer
            # would never be used -> single-buffer (VMEM matters on v7x).
            pl.BlockSpec((d, c_pad + d), lambda i: (0, 0),
                         pipeline_mode=pl.Buffered(1)),
            pl.BlockSpec((1, c_pad), lambda i: (0, 0),
                         pipeline_mode=pl.Buffered(1)),
        ],
        out_specs=pl.BlockSpec((None, 1, tn), lambda i: (i, 0, 0)),
        compiler_params=pltpu.CompilerParams(
            dimension_semantics=("parallel",),
            vmem_limit_bytes=vmem_limit,
        ),
    )(x_p, b_mat, t4_p)

    return out.reshape(n_pad)[:n]


def _reference(x, means, alpha):
    # Mirrors the PyTorch forward exactly (pure JAX, checking only).
    d2 = x[:, :, None] - means[None, :, :]                       # [N, D, C]
    q = jnp.einsum("nic,ij,njc->nc", d2, alpha, d2,
                   precision=jax.lax.Precision.HIGHEST)          # [N, C]
    return jnp.min(q, axis=1)                                    # [N]


if __name__ == "__main__":
    key = jax.random.PRNGKey(0)
    k_x, k_mu, k_cov = jax.random.split(key, 3)

    N, D, C = 8, 32, 4  # batch, feature dim, number of classes

    x = jax.random.normal(k_x, (N, D), dtype=jnp.float32)
    means = jax.random.normal(k_mu, (D, C), dtype=jnp.float32)

    # Deterministic symmetric positive-definite covariance, then invert
    # (mimics torch.inverse in __init__; plain-JAX setup glue).
    b = jax.random.normal(k_cov, (D, D), dtype=jnp.float32)
    covar = b @ b.T / D + jnp.eye(D, dtype=jnp.float32)
    alpha = jnp.linalg.inv(covar)

    out = jax.block_until_ready(mahalanobis_distance(x, means, alpha))
    ref = _reference(x, means, alpha)

    assert out.shape == (N,)
    assert jnp.allclose(out, ref, rtol=1e-4, atol=1e-3), (out, ref)

    print("KERNEL_OK")
</pallas_src>

<mosaic_0001>
module attributes {stable_mosaic.version = 11 : i64} {
  func.func @_mahalanobis_kernel(%arg0: i32, %arg1: memref<128x32xf32, #tpu.memory_space<vmem>>, %arg2: memref<32x160xf32, #tpu.memory_space<vmem>>, %arg3: memref<1x128xf32, #tpu.memory_space<vmem>>, %arg4: memref<1x1x128xf32, #tpu.memory_space<vmem>>) attributes {dimension_semantics = [#tpu.dimension_semantics<parallel>], iteration_bounds = array<i64: 1>, scalar_prefetch = 0 : i64, scratch_operands = 0 : i64, tpu.core_type = #tpu.core_type<tc>, window_params = [{transform_indices = @transform_0, window_bounds = array<i64: 128, 32>}, {pipeline_mode = #tpu.pipeline_mode<synchronous>, transform_indices = @transform_1, window_bounds = array<i64: 32, 160>}, {pipeline_mode = #tpu.pipeline_mode<synchronous>, transform_indices = @transform_2, window_bounds = array<i64: 1, 128>}, {transform_indices = @transform_3, window_bounds = array<i64: 1, 1, 128>}]} {
    %c0 = arith.constant 0 : index
    %c0_0 = arith.constant 0 : index
    %0 = vector.load %arg1[%c0, %c0_0] : memref<128x32xf32, #tpu.memory_space<vmem>>, vector<128x32xf32>
    %c0_1 = arith.constant 0 : index
    %c0_2 = arith.constant 0 : index
    %1 = vector.load %arg2[%c0_1, %c0_2] : memref<32x160xf32, #tpu.memory_space<vmem>>, vector<32x160xf32>
    %cst = arith.constant dense<0.000000e+00> : vector<128x160xf32>
    %2 = tpu.matmul %0, %1, %cst {dimension_numbers = #tpu.dot_dimension_numbers<[1], [0], [0], [1], [0, 0, 1, 1], [], []>, precision = #tpu.contract_precision<fp32>} : vector<128x32xf32>, vector<32x160xf32>, vector<128x160xf32> -> vector<128x160xf32>
    %3 = vector.extract_strided_slice %2 {offsets = [0, 0], sizes = [128, 128], strides = [1, 1]} : vector<128x160xf32> to vector<128x128xf32>
    %4 = vector.extract_strided_slice %2 {offsets = [0, 128], sizes = [128, 32], strides = [1, 1]} : vector<128x160xf32> to vector<128x32xf32>
    %5 = arith.mulf %4, %0 : vector<128x32xf32>
    %cst_3 = arith.constant dense<0.000000e+00> : vector<128xf32>
    %6 = vector.multi_reduction <add>, %5, %cst_3 [1] : vector<128x32xf32> to vector<128xf32>
    %7 = vector.shape_cast %6 : vector<128xf32> to vector<128x1xf32>
    %c0_4 = arith.constant 0 : index
    %c0_5 = arith.constant 0 : index
    %8 = vector.load %arg3[%c0_4, %c0_5] : memref<1x128xf32, #tpu.memory_space<vmem>>, vector<1x128xf32>
    %9 = vector.broadcast %8 : vector<1x128xf32> to vector<128x128xf32>
    %10 = arith.subf %9, %3 : vector<128x128xf32>
    %cst_6 = arith.constant dense<0x7F800000> : vector<128xf32>
    %11 = vector.multi_reduction <minimumf>, %10, %cst_6 [1] : vector<128x128xf32> to vector<128xf32>
    %12 = vector.shape_cast %11 : vector<128xf32> to vector<128x1xf32>
    %13 = arith.addf %7, %12 : vector<128x1xf32>
    %14 = vector.shape_cast %13 : vector<128x1xf32> to vector<128x1xf32>
    %15 = vector.broadcast %14 : vector<128x1xf32> to vector<128x128xf32>
    %16 = tpu.transpose %15, [1, 0] : vector<128x128xf32> -> vector<128x128xf32>
    %17 = vector.extract_strided_slice %16 {offsets = [0, 0], sizes = [1, 128], strides = [1, 1]} : vector<128x128xf32> to vector<1x128xf32>
    %c0_7 = arith.constant 0 : index
    %c0_8 = arith.constant 0 : index
    %c0_9 = arith.constant 0 : index
    %18 = vector.load %arg4[%c0_7, %c0_8, %c0_9] : memref<1x1x128xf32, #tpu.memory_space<vmem>>, vector<1x1x128xf32>
    %19 = vector.shape_cast %18 : vector<1x1x128xf32> to vector<1x128xf32>
    %20 = vector.shape_cast %17 : vector<1x128xf32> to vector<1x1x128xf32>
    tpu.vector_store %arg4[%c0_7, %c0_8, %c0_9], %20 {strides = array<i32>} : memref<1x1x128xf32, #tpu.memory_space<vmem>>, vector<1x1x128xf32>,
    return
  }
  func.func @transform_0(%arg0: i32) -> (i32, i32) {
    %c0_i32 = arith.constant 0 : i32
    %c0_i32_0 = arith.constant 0 : i32
    return %arg0, %c0_i32 : i32, i32
  }
  func.func @transform_1(%arg0: i32) -> (i32, i32) {
    %c0_i32 = arith.constant 0 : i32
    %c0_i32_0 = arith.constant 0 : i32
    %c0_i32_1 = arith.constant 0 : i32
    return %c0_i32, %c0_i32_0 : i32, i32
  }
  func.func @transform_2(%arg0: i32) -> (i32, i32) {
    %c0_i32 = arith.constant 0 : i32
    %c0_i32_0 = arith.constant 0 : i32
    %c0_i32_1 = arith.constant 0 : i32
    return %c0_i32, %c0_i32_0 : i32, i32
  }
  func.func @transform_3(%arg0: i32) -> (i32, i32, i32) {
    %c0_i32 = arith.constant 0 : i32
    %c0_i32_0 = arith.constant 0 : i32
    %c0_i32_1 = arith.constant 0 : i32
    return %arg0, %c0_i32, %c0_i32_0 : i32, i32, i32
  }
}

</mosaic_0001>

<llo_original>
// kernel: tpu_custom_call.1
$region0: #{tpu_custom_call.1}
  #allocation0 [shape = 'u32[]', space=smem, size = 0x4, offset = 0x4, fixed_abs, tag = 'smem constant byte address 0x4 - core index']
  #allocation1 [shape = 'u32[144,128]{1,0:T(1,128)}', space=vmem, size = 0x12000, scoped, tag = 'internal scratch']
  %s0 = inlined_call_operand.vmem [shape: f32[128,32], index: 0, kind: input, shape index: {}]
  %s1 = inlined_call_operand.vmem [shape: f32[32,160], index: 1, kind: input, shape index: {}]
  %s2 = inlined_call_operand.vmem [shape: f32[1,128], index: 2, kind: input, shape index: {}]
  %s3 = inlined_call_operand.hbm [shape: f32[1,1,128], index: 3, kind: output, shape index: {}]
  %s4 = sld [smem:[#allocation0]]
  $region22: #{tpu_custom_call.1} parent=0
    _
  %s6 = ssub.s32 1, %s4
  %s7 = scalar_select 0, %s6, %s4
  $region1: #{tpu_custom_call.1} parent=0
    #allocation2 [shape = 'u8[512]{0}', space=vmem, size = 0x400, scoped, tag = 'output window, operand 0, single buffered']
    #allocation3 [shape = 's32[1]{0}', space=sflag, size = 0x4, scoped, tag = 'scoped memory for tpu_custom_call.1']
    %8 = vsyncpa [#allocation3], 0
    // Predicated region
    $region2: #{tpu_custom_call.1} parent=1 // pred_check
      _
    $region3: #{tpu_custom_call.1} parent=1 // pred_check_branch
      %10 = sbr.rel (0) target = $region5
    $region4: #{tpu_custom_call.1} parent=1 // pred_region
      _
    $region5: #{tpu_custom_call.1} parent=1 // pred_fallthru
      _
    // Predicated region
    $region6: #{tpu_custom_call.1} parent=1 // pred_check
      _
    $region7: #{tpu_custom_call.1} parent=1 // pred_check_branch
      %12 = sbr.rel (0) target = $region9
    $region8: #{tpu_custom_call.1} parent=1 // pred_region
      _
    $region9: #{tpu_custom_call.1} parent=1 // pred_fallthru
      _
    // Predicated region
    $region10: #{tpu_custom_call.1} parent=1 // pred_check
      _
    $region11: #{tpu_custom_call.1} parent=1 // pred_check_branch
      %14 = sbr.rel (0) target = $region13
    $region12: #{tpu_custom_call.1} parent=1 // pred_region
      _
    $region13: #{tpu_custom_call.1} parent=1 // pred_fallthru
      _
    %v15 = vld [vmem:[%s0] sm:$0xff]
    %v16 = vld [vmem:[%s0 + $0x8] sm:$0xff]
    %v17 = vld [vmem:[%s0 + $0x10] sm:$0xff]
    %v18 = vld [vmem:[%s0 + $0x18] sm:$0xff]
    %v19 = vld [vmem:[%s0 + $0x20] sm:$0xff]
    %v20 = vld [vmem:[%s0 + $0x28] sm:$0xff]
    %v21 = vld [vmem:[%s0 + $0x30] sm:$0xff]
    %v22 = vld [vmem:[%s0 + $0x38] sm:$0xff]
    %v23 = vld [vmem:[%s0 + $0x40] sm:$0xff]
    %v24 = vld [vmem:[%s0 + $0x48] sm:$0xff]
    %v25 = vld [vmem:[%s0 + $0x50] sm:$0xff]
    %v26 = vld [vmem:[%s0 + $0x58] sm:$0xff]
    %v27 = vld [vmem:[%s0 + $0x60] sm:$0xff]
    %v28 = vld [vmem:[%s0 + $0x68] sm:$0xff]
    %v29 = vld [vmem:[%s0 + $0x70] sm:$0xff]
    %v30 = vld [vmem:[%s0 + $0x78] sm:$0xff]
    %v31 = vld [vmem:[%s1] sm:$0xff]
    %v32 = vld [vmem:[%s1 + $0x8] sm:$0xff]
    %v33 = vld [vmem:[%s1 + $0x10] sm:$0xff]
    %v34 = vld [vmem:[%s1 + $0x18] sm:$0xff]
    %v35 = vld [vmem:[%s1 + $0x20] sm:$0xff]
    %v36 = vld [vmem:[%s1 + $0x28] sm:$0xff]
    %v37 = vld [vmem:[%s1 + $0x30] sm:$0xff]
    %v38 = vld [vmem:[%s1 + $0x38] sm:$0xff]
    %vm39 = vcmask 261120
    %v41 = vsel %vm39, %v15, 0
    %v44 = vsel %vm39, %v16, 0
    %v47 = vsel %vm39, %v17, 0
    %v50 = vsel %vm39, %v18, 0
    %v53 = vsel %vm39, %v19, 0
    %v56 = vsel %vm39, %v20, 0
    %v59 = vsel %vm39, %v21, 0
    %v62 = vsel %vm39, %v22, 0
    %v65 = vsel %vm39, %v23, 0
    %v68 = vsel %vm39, %v24, 0
    %v71 = vsel %vm39, %v25, 0
    %v74 = vsel %vm39, %v26, 0
    %v77 = vsel %vm39, %v27, 0
    %v80 = vsel %vm39, %v28, 0
    %v83 = vsel %vm39, %v29, 0
    %v86 = vsel %vm39, %v30, 0
    %v88 = vand.u32 %v32, 4294901760
    %89 = vmatprep.subr.mxu0 %v88
    %v90 = vand.u32 %v31, 4294901760
    %91 = vmatpush1.msra.mxu0 %v90
    %v92 = vand.u32 %v34, 4294901760
    %93 = vmatprep.subr.mxu0 %v92
    %v94 = vand.u32 %v33, 4294901760
    %95 = vmatpush1.msra.mxu0 %v94
    %v96 = vand.u32 %v36, 4294901760
    %97 = vmatprep.subr.mxu0 %v96
    %v98 = vand.u32 %v35, 4294901760
    %99 = vmatpush1.msra.mxu0 %v98
    %v100 = vand.u32 %v38, 4294901760
    %101 = vmatprep.subr.mxu0 %v100
    %v102 = vand.u32 %v37, 4294901760
    %103 = vmatpush1.msra.mxu0 %v102
    %104 = vmatprep.subr.mxu0 0.0
    %105 = vmatpush1.msra.mxu0 0.0
    %106 = vmatprep.subr.mxu0 0.0
    %107 = vmatpush1.msra.mxu0 0.0
    %108 = vmatprep.subr.mxu0 0.0
    %109 = vmatpush1.msra.mxu0 0.0
    %110 = vmatprep.subr.mxu0 0.0
    %111 = vmatpush1.msra.mxu0 0.0
    %112 = vmatprep.subr.mxu0 0.0
    %113 = vmatpush1.msra.mxu0 0.0
    %114 = vmatprep.subr.mxu0 0.0
    %115 = vmatpush1.msra.mxu0 0.0
    %116 = vmatprep.subr.mxu0 0.0
    %117 = vmatpush1.msra.mxu0 0.0
    %118 = vmatprep.subr.mxu0 0.0
    %119 = vmatpush1.msra.mxu0 0.0
    %120 = vmatprep.subr.mxu0 0.0
    %121 = vmatpush1.msra.mxu0 0.0
    %122 = vmatprep.subr.mxu0 0.0
    %123 = vmatpush1.msra.mxu0 0.0
    %124 = vmatprep.subr.mxu0 0.0
    %125 = vmatpush1.msra.mxu0 0.0
    %126 = vmatprep.subr.mxu0 0.0
    %127 = vmatpush1.msra.mxu0 0.0
    %128 = vmatprep.subr.mxu0 0.0
    %129 = vmatpush1.msra.mxu0 0.0
    %130 = vmatprep.subr.mxu0 0.0
    %131 = vmatpush1.msra.mxu0 0.0
    %132 = vmatprep.subr.mxu0 0.0
    %133 = vmatpush1.msra.mxu0 0.0
    %134 = vmatprep.subr.mxu0 0.0
    %135 = vmatpush1.msra.mxu0 0.0
    %136 = vmatprep.subr.mxu0 0.0
    %137 = vmatpush1.msra.mxu0 0.0
    %138 = vmatprep.subr.mxu0 0.0
    %139 = vmatpush1.msra.mxu0 0.0
    %140 = vmatprep.subr.mxu0 0.0
    %141 = vmatpush1.msra.mxu0 0.0
    %142 = vmatprep.subr.mxu0 0.0
    %143 = vmatpush1.msra.mxu0 0.0
    %144 = vmatprep.subr.mxu0 0.0
    %145 = vmatpush1.msra.mxu0 0.0
    %146 = vmatprep.subr.mxu0 0.0
    %147 = vmatpush1.msra.mxu0 0.0
    %148 = vmatprep.subr.mxu0 0.0
    %149 = vmatpush1.msra.mxu0 0.0
    %150 = vmatprep.subr.mxu0 0.0
    %151 = vmatpush1.msra.mxu0 0.0
    %152 = vmatprep.subr.mxu0 0.0
    %153 = vmatpush1.msra.mxu0 0.0
    %154 = vmatprep.subr.mxu0 0.0
    %155 = vmatpush1.msra.mxu0 0.0
    %156 = vmatprep.subr.mxu0 0.0
    %157 = vmatpush1.msra.mxu0 0.0
    %158 = vmatprep.subr.mxu0 0.0
    %159 = vmatpush1.msra.mxu0 0.0
    %160 = vmatprep.mubr.f32.mxu0 0.0
    %v161 = vand.u32 %v41, 4294901760
    %v162 = vsub.f32 %v41, %v161
    %v163 = vand.u32 %v162, 4294901760
    %v164 = vsub.f32 %v162, %v163
    %v165 = vand.u32 %v164, 4294901760
    %166 = vmatmul.mubr.f32.gmra.mrb[0].mxu0 %v165
    %v167 = vpop.f32.mrb[0].mxu0
    %v168 = vadd.f32 0.0, %v167
    %v169 = vpop.f32.mrb[0].mxu0
    %v170 = vadd.f32 0.0, %v169
    %171 = vmatprep.mubr.f32.mxu0 0.0
    %v172 = vand.u32 %v44, 4294901760
    %v173 = vsub.f32 %v44, %v172
    %v174 = vand.u32 %v173, 4294901760
    %v175 = vsub.f32 %v173, %v174
    %v176 = vand.u32 %v175, 4294901760
    %177 = vmatmul.mubr.f32.gmra.mrb[0].mxu0 %v176
    %v178 = vpop.f32.mrb[0].mxu0
    %v179 = vadd.f32 0.0, %v178
    %v180 = vpop.f32.mrb[0].mxu0
    %v181 = vadd.f32 0.0, %v180
    %182 = vmatprep.mubr.f32.mxu0 0.0
    %v183 = vand.u32 %v47, 4294901760
    %v184 = vsub.f32 %v47, %v183
    %v185 = vand.u32 %v184, 4294901760
    %v186 = vsub.f32 %v184, %v185
    %v187 = vand.u32 %v186, 4294901760
    %188 = vmatmul.mubr.f32.gmra.mrb[0].mxu0 %v187
    %v189 = vpop.f32.mrb[0].mxu0
    %v190 = vadd.f32 0.0, %v189
    %v191 = vpop.f32.mrb[0].mxu0
    %v192 = vadd.f32 0.0, %v191
    %193 = vmatprep.mubr.f32.mxu0 0.0
    %v194 = vand.u32 %v50, 4294901760
    %v195 = vsub.f32 %v50, %v194
    %v196 = vand.u32 %v195, 4294901760
    %v197 = vsub.f32 %v195, %v196
    %v198 = vand.u32 %v197, 4294901760
    %199 = vmatmul.mubr.f32.gmra.mrb[0].mxu0 %v198
    %v200 = vpop.f32.mrb[0].mxu0
    %v201 = vadd.f32 0.0, %v200
    %v202 = vpop.f32.mrb[0].mxu0
    %v203 = vadd.f32 0.0, %v202
    %204 = vmatprep.mubr.f32.mxu0 0.0
    %v205 = vand.u32 %v53, 4294901760
    %v206 = vsub.f32 %v53, %v205
    %v207 = vand.u32 %v206, 4294901760
    %v208 = vsub.f32 %v206, %v207
    %v209 = vand.u32 %v208, 4294901760
    %210 = vmatmul.mubr.f32.gmra.mrb[0].mxu0 %v209
    %v211 = vpop.f32.mrb[0].mxu0
    %v212 = vadd.f32 0.0, %v211
    %v213 = vpop.f32.mrb[0].mxu0
    %v214 = vadd.f32 0.0, %v213
    %215 = vmatprep.mubr.f32.mxu0 0.0
    %v216 = vand.u32 %v56, 4294901760
    %v217 = vsub.f32 %v56, %v216
    %v218 = vand.u32 %v217, 4294901760
    %v219 = vsub.f32 %v217, %v218
    %v220 = vand.u32 %v219, 4294901760
    %221 = vmatmul.mubr.f32.gmra.mrb[0].mxu0 %v220
    %v222 = vpop.f32.mrb[0].mxu0
    %v223 = vadd.f32 0.0, %v222
    %v224 = vpop.f32.mrb[0].mxu0
    %v225 = vadd.f32 0.0, %v224
    %226 = vmatprep.mubr.f32.mxu0 0.0
    %v227 = vand.u32 %v59, 4294901760
    %v228 = vsub.f32 %v59, %v227
    %v229 = vand.u32 %v228, 4294901760
    %v230 = vsub.f32 %v228, %v229
    %v231 = vand.u32 %v230, 4294901760
    %232 = vmatmul.mubr.f32.gmra.mrb[0].mxu0 %v231
    %v233 = vpop.f32.mrb[0].mxu0
    %v234 = vadd.f32 0.0, %v233
    %v235 = vpop.f32.mrb[0].mxu0
    %v236 = vadd.f32 0.0, %v235
    %237 = vmatprep.mubr.f32.mxu0 0.0
    %v238 = vand.u32 %v62, 4294901760
    %v239 = vsub.f32 %v62, %v238
    %v240 = vand.u32 %v239, 4294901760
    %v241 = vsub.f32 %v239, %v240
    %v242 = vand.u32 %v241, 4294901760
    %243 = vmatmul.mubr.f32.gmra.mrb[0].mxu0 %v242
    %v244 = vpop.f32.mrb[0].mxu0
    %v245 = vadd.f32 0.0, %v244
    %v246 = vpop.f32.mrb[0].mxu0
    %v247 = vadd.f32 0.0, %v246
    %248 = vmatprep.mubr.f32.mxu0 0.0
    %v249 = vand.u32 %v65, 4294901760
    %v250 = vsub.f32 %v65, %v249
    %v251 = vand.u32 %v250, 4294901760
    %v252 = vsub.f32 %v250, %v251
    %v253 = vand.u32 %v252, 4294901760
    %254 = vmatmul.mubr.f32.gmra.mrb[0].mxu0 %v253
    %v255 = vpop.f32.mrb[0].mxu0
    %v256 = vadd.f32 0.0, %v255
    %v257 = vpop.f32.mrb[0].mxu0
    %v258 = vadd.f32 0.0, %v257
    %259 = vmatprep.mubr.f32.mxu0 0.0
    %v260 = vand.u32 %v68, 4294901760
    %v261 = vsub.f32 %v68, %v260
    %v262 = vand.u32 %v261, 4294901760
    %v263 = vsub.f32 %v261, %v262
    %v264 = vand.u32 %v263, 4294901760
    %265 = vmatmul.mubr.f32.gmra.mrb[0].mxu0 %v264
    %v266 = vpop.f32.mrb[0].mxu0
    %v267 = vadd.f32 0.0, %v266
    %v268 = vpop.f32.mrb[0].mxu0
    %v269 = vadd.f32 0.0, %v268
    %270 = vmatprep.mubr.f32.mxu0 0.0
    %v271 = vand.u32 %v71, 4294901760
    %v272 = vsub.f32 %v71, %v271
    %v273 = vand.u32 %v272, 4294901760
    %v274 = vsub.f32 %v272, %v273
    %v275 = vand.u32 %v274, 4294901760
    %276 = vmatmul.mubr.f32.gmra.mrb[0].mxu0 %v275
    %v277 = vpop.f32.mrb[0].mxu0
    %v278 = vadd.f32 0.0, %v277
    %v279 = vpop.f32.mrb[0].mxu0
    %v280 = vadd.f32 0.0, %v279
    %281 = vmatprep.mubr.f32.mxu0 0.0
    %v282 = vand.u32 %v74, 4294901760
    %v283 = vsub.f32 %v74, %v282
    %v284 = vand.u32 %v283, 4294901760
    %v285 = vsub.f32 %v283, %v284
    %v286 = vand.u32 %v285, 4294901760
    %287 = vmatmul.mubr.f32.gmra.mrb[0].mxu0 %v286
    %v288 = vpop.f32.mrb[0].mxu0
    %v289 = vadd.f32 0.0, %v288
    %v290 = vpop.f32.mrb[0].mxu0
    %v291 = vadd.f32 0.0, %v290
    %292 = vmatprep.mubr.f32.mxu0 0.0
    %v293 = vand.u32 %v77, 4294901760
    %v294 = vsub.f32 %v77, %v293
    %v295 = vand.u32 %v294, 4294901760
    %v296 = vsub.f32 %v294, %v295
    %v297 = vand.u32 %v296, 4294901760
    %298 = vmatmul.mubr.f32.gmra.mrb[0].mxu0 %v297
    %v299 = vpop.f32.mrb[0].mxu0
    %v300 = vadd.f32 0.0, %v299
    %v301 = vpop.f32.mrb[0].mxu0
    %v302 = vadd.f32 0.0, %v301
    %303 = vmatprep.mubr.f32.mxu0 0.0
    %v304 = vand.u32 %v80, 4294901760
    %v305 = vsub.f32 %v80, %v304
    %v306 = vand.u32 %v305, 4294901760
    %v307 = vsub.f32 %v305, %v306
    %v308 = vand.u32 %v307, 4294901760
    %309 = vmatmul.mubr.f32.gmra.mrb[0].mxu0 %v308
    %v310 = vpop.f32.mrb[0].mxu0
    %v311 = vadd.f32 0.0, %v310
    %v312 = vpop.f32.mrb[0].mxu0
    %v313 = vadd.f32 0.0, %v312
    %314 = vmatprep.mubr.f32.mxu0 0.0
    %v315 = vand.u32 %v83, 4294901760
    %v316 = vsub.f32 %v83, %v315
    %v317 = vand.u32 %v316, 4294901760
    %v318 = vsub.f32 %v316, %v317
    %v319 = vand.u32 %v318, 4294901760
    %320 = vmatmul.mubr.f32.gmra.mrb[0].mxu0 %v319
    %v321 = vpop.f32.mrb[0].mxu0
    %v322 = vadd.f32 0.0, %v321
    %v323 = vpop.f32.mrb[0].mxu0
    %v324 = vadd.f32 0.0, %v323
    %325 = vmatprep.mubr.f32.mxu0 0.0
    %v326 = vand.u32 %v86, 4294901760
    %v327 = vsub.f32 %v86, %v326
    %v328 = vand.u32 %v327, 4294901760
    %v329 = vsub.f32 %v327, %v328
    %v330 = vand.u32 %v329, 4294901760
    %331 = vmatmul.mubr.f32.gmra.mrb[0].mxu0 %v330
    %v332 = vpop.f32.mrb[0].mxu0
    %v333 = vadd.f32 0.0, %v332
    %v334 = vpop.f32.mrb[0].mxu0
    %v335 = vadd.f32 0.0, %v334
    %336 = vdwg.mxu0
    %v337 = vand.u32 %v32, 4294901760
    %v338 = vsub.f32 %v32, %v337
    %v339 = vand.u32 %v338, 4294901760
    %v340 = vsub.f32 %v338, %v339
    %v341 = vand.u32 %v340, 4294901760
    %342 = vmatprep.subr.mxu0 %v341
    %v343 = vand.u32 %v31, 4294901760
    %v344 = vsub.f32 %v31, %v343
    %v345 = vand.u32 %v344, 4294901760
    %v346 = vsub.f32 %v344, %v345
    %v347 = vand.u32 %v346, 4294901760
    %348 = vmatpush1.msra.mxu0 %v347
    %v349 = vand.u32 %v34, 4294901760
    %v350 = vsub.f32 %v34, %v349
    %v351 = vand.u32 %v350, 4294901760
    %v352 = vsub.f32 %v350, %v351
    %v353 = vand.u32 %v352, 4294901760
    %354 = vmatprep.subr.mxu0 %v353
    %v355 = vand.u32 %v33, 4294901760
    %v356 = vsub.f32 %v33, %v355
    %v357 = vand.u32 %v356, 4294901760
    %v358 = vsub.f32 %v356, %v357
    %v359 = vand.u32 %v358, 4294901760
    %360 = vmatpush1.msra.mxu0 %v359
    %v361 = vand.u32 %v36, 4294901760
    %v362 = vsub.f32 %v36, %v361
    %v363 = vand.u32 %v362, 4294901760
    %v364 = vsub.f32 %v362, %v363
    %v365 = vand.u32 %v364, 4294901760
    %366 = vmatprep.subr.mxu0 %v365
    %v367 = vand.u32 %v35, 4294901760
    %v368 = vsub.f32 %v35, %v367
    %v369 = vand.u32 %v368, 4294901760
    %v370 = vsub.f32 %v368, %v369
    %v371 = vand.u32 %v370, 4294901760
    %372 = vmatpush1.msra.mxu0 %v371
    %v373 = vand.u32 %v38, 4294901760
    %v374 = vsub.f32 %v38, %v373
    %v375 = vand.u32 %v374, 4294901760
    %v376 = vsub.f32 %v374, %v375
    %v377 = vand.u32 %v376, 4294901760
    %378 = vmatprep.subr.mxu0 %v377
    %v379 = vand.u32 %v37, 4294901760
    %v380 = vsub.f32 %v37, %v379
    %v381 = vand.u32 %v380, 4294901760
    %v382 = vsub.f32 %v380, %v381
    %v383 = vand.u32 %v382, 4294901760
    %384 = vmatpush1.msra.mxu0 %v383
    %385 = vmatprep.subr.mxu0 0.0
    %386 = vmatpush1.msra.mxu0 0.0
    %387 = vmatprep.subr.mxu0 0.0
    %388 = vmatpush1.msra.mxu0 0.0
    %389 = vmatprep.subr.mxu0 0.0
    %390 = vmatpush1.msra.mxu0 0.0
    %391 = vmatprep.subr.mxu0 0.0
    %392 = vmatpush1.msra.mxu0 0.0
    %393 = vmatprep.subr.mxu0 0.0
    %394 = vmatpush1.msra.mxu0 0.0
    %395 = vmatprep.subr.mxu0 0.0
    %396 = vmatpush1.msra.mxu0 0.0
    %397 = vmatprep.subr.mxu0 0.0
    %398 = vmatpush1.msra.mxu0 0.0
    %399 = vmatprep.subr.mxu0 0.0
    %400 = vmatpush1.msra.mxu0 0.0
    %401 = vmatprep.subr.mxu0 0.0
    %402 = vmatpush1.msra.mxu0 0.0
    %403 = vmatprep.subr.mxu0 0.0
    %404 = vmatpush1.msra.mxu0 0.0
    %405 = vmatprep.subr.mxu0 0.0
    %406 = vmatpush1.msra.mxu0 0.0
    %407 = vmatprep.subr.mxu0 0.0
    %408 = vmatpush1.msra.mxu0 0.0
    %409 = vmatprep.subr.mxu0 0.0
    %410 = vmatpush1.msra.mxu0 0.0
    %411 = vmatprep.subr.mxu0 0.0
    %412 = vmatpush1.msra.mxu0 0.0
    %413 = vmatprep.subr.mxu0 0.0
    %414 = vmatpush1.msra.mxu0 0.0
    %415 = vmatprep.subr.mxu0 0.0
    %416 = vmatpush1.msra.mxu0 0.0
    %417 = vmatprep.subr.mxu0 0.0
    %418 = vmatpush1.msra.mxu0 0.0
    %419 = vmatprep.subr.mxu0 0.0
    %420 = vmatpush1.msra.mxu0 0.0
    %421 = vmatprep.subr.mxu0 0.0
    %422 = vmatpush1.msra.mxu0 0.0
    %423 = vmatprep.subr.mxu0 0.0
    %424 = vmatpush1.msra.mxu0 0.0
    %425 = vmatprep.subr.mxu0 0.0
    %426 = vmatpush1.msra.mxu0 0.0
    %427 = vmatprep.subr.mxu0 0.0
    %428 = vmatpush1.msra.mxu0 0.0
    %429 = vmatprep.subr.mxu0 0.0
    %430 = vmatpush1.msra.mxu0 0.0
    %431 = vmatprep.subr.mxu0 0.0
    %432 = vmatpush1.msra.mxu0 0.0
    %433 = vmatprep.subr.mxu0 0.0
    %434 = vmatpush1.msra.mxu0 0.0
    %435 = vmatprep.subr.mxu0 0.0
    %436 = vmatpush1.msra.mxu0 0.0
    %437 = vmatprep.subr.mxu0 0.0
    %438 = vmatpush1.msra.mxu0 0.0
    %439 = vmatprep.subr.mxu0 0.0
    %440 = vmatpush1.msra.mxu0 0.0
    %441 = vmatprep.mubr.f32.mxu0 0.0
    %v442 = vand.u32 %v41, 4294901760
    %443 = vmatmul.mubr.f32.gmra.mrb[0].mxu0 %v442
    %v444 = vpop.f32.mrb[0].mxu0
    %v445 = vadd.f32 %v168, %v444
    %v446 = vpop.f32.mrb[0].mxu0
    %v447 = vadd.f32 %v170, %v446
    %448 = vmatprep.mubr.f32.mxu0 0.0
    %v449 = vand.u32 %v44, 4294901760
    %450 = vmatmul.mubr.f32.gmra.mrb[0].mxu0 %v449
    %v451 = vpop.f32.mrb[0].mxu0
    %v452 = vadd.f32 %v179, %v451
    %v453 = vpop.f32.mrb[0].mxu0
    %v454 = vadd.f32 %v181, %v453
    %455 = vmatprep.mubr.f32.mxu0 0.0
    %v456 = vand.u32 %v47, 4294901760
    %457 = vmatmul.mubr.f32.gmra.mrb[0].mxu0 %v456
    %v458 = vpop.f32.mrb[0].mxu0
    %v459 = vadd.f32 %v190, %v458
    %v460 = vpop.f32.mrb[0].mxu0
    %v461 = vadd.f32 %v192, %v460
    %462 = vmatprep.mubr.f32.mxu0 0.0
    %v463 = vand.u32 %v50, 4294901760
    %464 = vmatmul.mubr.f32.gmra.mrb[0].mxu0 %v463
    %v465 = vpop.f32.mrb[0].mxu0
    %v466 = vadd.f32 %v201, %v465
    %v467 = vpop.f32.mrb[0].mxu0
    %v468 = vadd.f32 %v203, %v467
    %469 = vmatprep.mubr.f32.mxu0 0.0
    %v470 = vand.u32 %v53, 4294901760
    %471 = vmatmul.mubr.f32.gmra.mrb[0].mxu0 %v470
    %v472 = vpop.f32.mrb[0].mxu0
    %v473 = vadd.f32 %v212, %v472
    %v474 = vpop.f32.mrb[0].mxu0
    %v475 = vadd.f32 %v214, %v474
    %476 = vmatprep.mubr.f32.mxu0 0.0
    %v477 = vand.u32 %v56, 4294901760
    %478 = vmatmul.mubr.f32.gmra.mrb[0].mxu0 %v477
    %v479 = vpop.f32.mrb[0].mxu0
    %v480 = vadd.f32 %v223, %v479
    %v481 = vpop.f32.mrb[0].mxu0
    %v482 = vadd.f32 %v225, %v481
    %483 = vmatprep.mubr.f32.mxu0 0.0
    %v484 = vand.u32 %v59, 4294901760
    %485 = vmatmul.mubr.f32.gmra.mrb[0].mxu0 %v484
    %v486 = vpop.f32.mrb[0].mxu0
    %v487 = vadd.f32 %v234, %v486
    %v488 = vpop.f32.mrb[0].mxu0
    %v489 = vadd.f32 %v236, %v488
    %490 = vmatprep.mubr.f32.mxu0 0.0
    %v491 = vand.u32 %v62, 4294901760
    %492 = vmatmul.mubr.f32.gmra.mrb[0].mxu0 %v491
    %v493 = vpop.f32.mrb[0].mxu0
    %v494 = vadd.f32 %v245, %v493
    %v495 = vpop.f32.mrb[0].mxu0
    %v496 = vadd.f32 %v247, %v495
    %497 = vmatprep.mubr.f32.mxu0 0.0
    %v498 = vand.u32 %v65, 4294901760
    %499 = vmatmul.mubr.f32.gmra.mrb[0].mxu0 %v498
    %v500 = vpop.f32.mrb[0].mxu0
    %v501 = vadd.f32 %v256, %v500
    %v502 = vpop.f32.mrb[0].mxu0
    %v503 = vadd.f32 %v258, %v502
    %504 = vmatprep.mubr.f32.mxu0 0.0
    %v505 = vand.u32 %v68, 4294901760
    %506 = vmatmul.mubr.f32.gmra.mrb[0].mxu0 %v505
    %v507 = vpop.f32.mrb[0].mxu0
    %v508 = vadd.f32 %v267, %v507
    %v509 = vpop.f32.mrb[0].mxu0
    %v510 = vadd.f32 %v269, %v509
    %511 = vmatprep.mubr.f32.mxu0 0.0
    %v512 = vand.u32 %v71, 4294901760
    %513 = vmatmul.mubr.f32.gmra.mrb[0].mxu0 %v512
    %v514 = vpop.f32.mrb[0].mxu0
    %v515 = vadd.f32 %v278, %v514
    %v516 = vpop.f32.mrb[0].mxu0
    %v517 = vadd.f32 %v280, %v516
    %518 = vmatprep.mubr.f32.mxu0 0.0
    %v519 = vand.u32 %v74, 4294901760
    %520 = vmatmul.mubr.f32.gmra.mrb[0].mxu0 %v519
    %v521 = vpop.f32.mrb[0].mxu0
    %v522 = vadd.f32 %v289, %v521
    %v523 = vpop.f32.mrb[0].mxu0
    %v524 = vadd.f32 %v291, %v523
    %525 = vmatprep.mubr.f32.mxu0 0.0
    %v526 = vand.u32 %v77, 4294901760
    %527 = vmatmul.mubr.f32.gmra.mrb[0].mxu0 %v526
    %v528 = vpop.f32.mrb[0].mxu0
    %v529 = vadd.f32 %v300, %v528
    %v530 = vpop.f32.mrb[0].mxu0
    %v531 = vadd.f32 %v302, %v530
    %532 = vmatprep.mubr.f32.mxu0 0.0
    %v533 = vand.u32 %v80, 4294901760
    %534 = vmatmul.mubr.f32.gmra.mrb[0].mxu0 %v533
    %v535 = vpop.f32.mrb[0].mxu0
    %v536 = vadd.f32 %v311, %v535
    %v537 = vpop.f32.mrb[0].mxu0
    %v538 = vadd.f32 %v313, %v537
    %539 = vmatprep.mubr.f32.mxu0 0.0
    %v540 = vand.u32 %v83, 4294901760
    %541 = vmatmul.mubr.f32.gmra.mrb[0].mxu0 %v540
    %v542 = vpop.f32.mrb[0].mxu0
    %v543 = vadd.f32 %v322, %v542
    %v544 = vpop.f32.mrb[0].mxu0
    %v545 = vadd.f32 %v324, %v544
    %546 = vmatprep.mubr.f32.mxu0 0.0
    %v547 = vand.u32 %v86, 4294901760
    %548 = vmatmul.mubr.f32.gmra.mrb[0].mxu0 %v547
    %v549 = vpop.f32.mrb[0].mxu0
    %v550 = vadd.f32 %v333, %v549
    %v551 = vpop.f32.mrb[0].mxu0
    %v552 = vadd.f32 %v335, %v551
    %553 = vdwg.mxu0
    %v554 = vand.u32 %v32, 4294901760
    %v555 = vsub.f32 %v32, %v554
    %556 = vmatprep.subr.mxu0 %v555
    %v557 = vand.u32 %v31, 4294901760
    %v558 = vsub.f32 %v31, %v557
    %559 = vmatpush1.msra.mxu0 %v558
    %v560 = vand.u32 %v34, 4294901760
    %v561 = vsub.f32 %v34, %v560
    %562 = vmatprep.subr.mxu0 %v561
    %v563 = vand.u32 %v33, 4294901760
    %v564 = vsub.f32 %v33, %v563
    %565 = vmatpush1.msra.mxu0 %v564
    %v566 = vand.u32 %v36, 4294901760
    %v567 = vsub.f32 %v36, %v566
    %568 = vmatprep.subr.mxu0 %v567
    %v569 = vand.u32 %v35, 4294901760
    %v570 = vsub.f32 %v35, %v569
    %571 = vmatpush1.msra.mxu0 %v570
    %v572 = vand.u32 %v38, 4294901760
    %v573 = vsub.f32 %v38, %v572
    %574 = vmatprep.subr.mxu0 %v573
    %v575 = vand.u32 %v37, 4294901760
    %v576 = vsub.f32 %v37, %v575
    %577 = vmatpush1.msra.mxu0 %v576
    %578 = vmatprep.subr.mxu0 0.0
    %579 = vmatpush1.msra.mxu0 0.0
    %580 = vmatprep.subr.mxu0 0.0
    %581 = vmatpush1.msra.mxu0 0.0
    %582 = vmatprep.subr.mxu0 0.0
    %583 = vmatpush1.msra.mxu0 0.0
    %584 = vmatprep.subr.mxu0 0.0
    %585 = vmatpush1.msra.mxu0 0.0
    %586 = vmatprep.subr.mxu0 0.0
    %587 = vmatpush1.msra.mxu0 0.0
    %588 = vmatprep.subr.mxu0 0.0
    %589 = vmatpush1.msra.mxu0 0.0
    %590 = vmatprep.subr.mxu0 0.0
    %591 = vmatpush1.msra.mxu0 0.0
    %592 = vmatprep.subr.mxu0 0.0
    %593 = vmatpush1.msra.mxu0 0.0
    %594 = vmatprep.subr.mxu0 0.0
    %595 = vmatpush1.msra.mxu0 0.0
    %596 = vmatprep.subr.mxu0 0.0
    %597 = vmatpush1.msra.mxu0 0.0
    %598 = vmatprep.subr.mxu0 0.0
    %599 = vmatpush1.msra.mxu0 0.0
    %600 = vmatprep.subr.mxu0 0.0
    %601 = vmatpush1.msra.mxu0 0.0
    %602 = vmatprep.subr.mxu0 0.0
    %603 = vmatpush1.msra.mxu0 0.0
    %604 = vmatprep.subr.mxu0 0.0
    %605 = vmatpush1.msra.mxu0 0.0
    %606 = vmatprep.subr.mxu0 0.0
    %607 = vmatpush1.msra.mxu0 0.0
    %608 = vmatprep.subr.mxu0 0.0
    %609 = vmatpush1.msra.mxu0 0.0
    %610 = vmatprep.subr.mxu0 0.0
    %611 = vmatpush1.msra.mxu0 0.0
    %612 = vmatprep.subr.mxu0 0.0
    %613 = vmatpush1.msra.mxu0 0.0
    %614 = vmatprep.subr.mxu0 0.0
    %615 = vmatpush1.msra.mxu0 0.0
    %616 = vmatprep.subr.mxu0 0.0
    %617 = vmatpush1.msra.mxu0 0.0
    %618 = vmatprep.subr.mxu0 0.0
    %619 = vmatpush1.msra.mxu0 0.0
    %620 = vmatprep.subr.mxu0 0.0
    %621 = vmatpush1.msra.mxu0 0.0
    %622 = vmatprep.subr.mxu0 0.0
    %623 = vmatpush1.msra.mxu0 0.0
    %624 = vmatprep.subr.mxu0 0.0
    %625 = vmatpush1.msra.mxu0 0.0
    %626 = vmatprep.subr.mxu0 0.0
    %627 = vmatpush1.msra.mxu0 0.0
    %628 = vmatprep.subr.mxu0 0.0
    %629 = vmatpush1.msra.mxu0 0.0
    %630 = vmatprep.subr.mxu0 0.0
    %631 = vmatpush1.msra.mxu0 0.0
    %632 = vmatprep.subr.mxu0 0.0
    %633 = vmatpush1.msra.mxu0 0.0
    %634 = vmatprep.mubr.f32.mxu0 0.0
    %v635 = vand.u32 %v41, 4294901760
    %v636 = vsub.f32 %v41, %v635
    %637 = vmatmul.mubr.f32.gmra.mrb[0].mxu0 %v636
    %v638 = vpop.f32.mrb[0].mxu0
    %v639 = vadd.f32 %v445, %v638
    %v640 = vpop.f32.mrb[0].mxu0
    %v641 = vadd.f32 %v447, %v640
    %642 = vmatprep.mubr.f32.mxu0 0.0
    %v643 = vand.u32 %v44, 4294901760
    %v644 = vsub.f32 %v44, %v643
    %645 = vmatmul.mubr.f32.gmra.mrb[0].mxu0 %v644
    %v646 = vpop.f32.mrb[0].mxu0
    %v647 = vadd.f32 %v452, %v646
    %v648 = vpop.f32.mrb[0].mxu0
    %v649 = vadd.f32 %v454, %v648
    %650 = vmatprep.mubr.f32.mxu0 0.0
    %v651 = vand.u32 %v47, 4294901760
    %v652 = vsub.f32 %v47, %v651
    %653 = vmatmul.mubr.f32.gmra.mrb[0].mxu0 %v652
    %v654 = vpop.f32.mrb[0].mxu0
    %v655 = vadd.f32 %v459, %v654
    %v656 = vpop.f32.mrb[0].mxu0
    %v657 = vadd.f32 %v461, %v656
    %658 = vmatprep.mubr.f32.mxu0 0.0
    %v659 = vand.u32 %v50, 4294901760
    %v660 = vsub.f32 %v50, %v659
    %661 = vmatmul.mubr.f32.gmra.mrb[0].mxu0 %v660
    %v662 = vpop.f32.mrb[0].mxu0
    %v663 = vadd.f32 %v466, %v662
    %v664 = vpop.f32.mrb[0].mxu0
    %v665 = vadd.f32 %v468, %v664
    %666 = vmatprep.mubr.f32.mxu0 0.0
    %v667 = vand.u32 %v53, 4294901760
    %v668 = vsub.f32 %v53, %v667
    %669 = vmatmul.mubr.f32.gmra.mrb[0].mxu0 %v668
    %v670 = vpop.f32.mrb[0].mxu0
    %v671 = vadd.f32 %v473, %v670
    %v672 = vpop.f32.mrb[0].mxu0
    %v673 = vadd.f32 %v475, %v672
    %674 = vmatprep.mubr.f32.mxu0 0.0
    %v675 = vand.u32 %v56, 4294901760
    %v676 = vsub.f32 %v56, %v675
    %677 = vmatmul.mubr.f32.gmra.mrb[0].mxu0 %v676
    %v678 = vpop.f32.mrb[0].mxu0
    %v679 = vadd.f32 %v480, %v678
    %v680 = vpop.f32.mrb[0].mxu0
    %v681 = vadd.f32 %v482, %v680
    %682 = vmatprep.mubr.f32.mxu0 0.0
    %v683 = vand.u32 %v59, 4294901760
    %v684 = vsub.f32 %v59, %v683
    %685 = vmatmul.mubr.f32.gmra.mrb[0].mxu0 %v684
    %v686 = vpop.f32.mrb[0].mxu0
    %v687 = vadd.f32 %v487, %v686
    %v688 = vpop.f32.mrb[0].mxu0
    %v689 = vadd.f32 %v489, %v688
    %690 = vmatprep.mubr.f32.mxu0 0.0
    %v691 = vand.u32 %v62, 4294901760
    %v692 = vsub.f32 %v62, %v691
    %693 = vmatmul.mubr.f32.gmra.mrb[0].mxu0 %v692
    %v694 = vpop.f32.mrb[0].mxu0
    %v695 = vadd.f32 %v494, %v694
    %v696 = vpop.f32.mrb[0].mxu0
    %v697 = vadd.f32 %v496, %v696
    %698 = vmatprep.mubr.f32.mxu0 0.0
    %v699 = vand.u32 %v65, 4294901760
    %v700 = vsub.f32 %v65, %v699
    %701 = vmatmul.mubr.f32.gmra.mrb[0].mxu0 %v700
    %v702 = vpop.f32.mrb[0].mxu0
    %v703 = vadd.f32 %v501, %v702
    %v704 = vpop.f32.mrb[0].mxu0
    %v705 = vadd.f32 %v503, %v704
    %706 = vmatprep.mubr.f32.mxu0 0.0
    %v707 = vand.u32 %v68, 4294901760
    %v708 = vsub.f32 %v68, %v707
    %709 = vmatmul.mubr.f32.gmra.mrb[0].mxu0 %v708
    %v710 = vpop.f32.mrb[0].mxu0
    %v711 = vadd.f32 %v508, %v710
    %v712 = vpop.f32.mrb[0].mxu0
    %v713 = vadd.f32 %v510, %v712
    %714 = vmatprep.mubr.f32.mxu0 0.0
    %v715 = vand.u32 %v71, 4294901760
    %v716 = vsub.f32 %v71, %v715
    %717 = vmatmul.mubr.f32.gmra.mrb[0].mxu0 %v716
    %v718 = vpop.f32.mrb[0].mxu0
    %v719 = vadd.f32 %v515, %v718
    %v720 = vpop.f32.mrb[0].mxu0
    %v721 = vadd.f32 %v517, %v720
    %722 = vmatprep.mubr.f32.mxu0 0.0
    %v723 = vand.u32 %v74, 4294901760
    %v724 = vsub.f32 %v74, %v723
    %725 = vmatmul.mubr.f32.gmra.mrb[0].mxu0 %v724
    %v726 = vpop.f32.mrb[0].mxu0
    %v727 = vadd.f32 %v522, %v726
    %v728 = vpop.f32.mrb[0].mxu0
    %v729 = vadd.f32 %v524, %v728
    %730 = vmatprep.mubr.f32.mxu0 0.0
    %v731 = vand.u32 %v77, 4294901760
    %v732 = vsub.f32 %v77, %v731
    %733 = vmatmul.mubr.f32.gmra.mrb[0].mxu0 %v732
    %v734 = vpop.f32.mrb[0].mxu0
    %v735 = vadd.f32 %v529, %v734
    %v736 = vpop.f32.mrb[0].mxu0
    %v737 = vadd.f32 %v531, %v736
    %738 = vmatprep.mubr.f32.mxu0 0.0
    %v739 = vand.u32 %v80, 4294901760
    %v740 = vsub.f32 %v80, %v739
    %741 = vmatmul.mubr.f32.gmra.mrb[0].mxu0 %v740
    %v742 = vpop.f32.mrb[0].mxu0
    %v743 = vadd.f32 %v536, %v742
    %v744 = vpop.f32.mrb[0].mxu0
    %v745 = vadd.f32 %v538, %v744
    %746 = vmatprep.mubr.f32.mxu0 0.0
    %v747 = vand.u32 %v83, 4294901760
    %v748 = vsub.f32 %v83, %v747
    %749 = vmatmul.mubr.f32.gmra.mrb[0].mxu0 %v748
    %v750 = vpop.f32.mrb[0].mxu0
    %v751 = vadd.f32 %v543, %v750
    %v752 = vpop.f32.mrb[0].mxu0
    %v753 = vadd.f32 %v545, %v752
    %754 = vmatprep.mubr.f32.mxu0 0.0
    %v755 = vand.u32 %v86, 4294901760
    %v756 = vsub.f32 %v86, %v755
    %757 = vmatmul.mubr.f32.gmra.mrb[0].mxu0 %v756
    %v758 = vpop.f32.mrb[0].mxu0
    %v759 = vadd.f32 %v550, %v758
    %v760 = vpop.f32.mrb[0].mxu0
    %v761 = vadd.f32 %v552, %v760
    %762 = vdwg.mxu0
    %v763 = vand.u32 %v32, 4294901760
    %764 = vmatprep.subr.mxu0 %v763
    %v765 = vand.u32 %v31, 4294901760
    %766 = vmatpush1.msra.mxu0 %v765
    %v767 = vand.u32 %v34, 4294901760
    %768 = vmatprep.subr.mxu0 %v767
    %v769 = vand.u32 %v33, 4294901760
    %770 = vmatpush1.msra.mxu0 %v769
    %v771 = vand.u32 %v36, 4294901760
    %772 = vmatprep.subr.mxu0 %v771
    %v773 = vand.u32 %v35, 4294901760
    %774 = vmatpush1.msra.mxu0 %v773
    %v775 = vand.u32 %v38, 4294901760
    %776 = vmatprep.subr.mxu0 %v775
    %v777 = vand.u32 %v37, 4294901760
    %778 = vmatpush1.msra.mxu0 %v777
    %779 = vmatprep.subr.mxu0 0.0
    %780 = vmatpush1.msra.mxu0 0.0
    %781 = vmatprep.subr.mxu0 0.0
    %782 = vmatpush1.msra.mxu0 0.0
    %783 = vmatprep.subr.mxu0 0.0
    %784 = vmatpush1.msra.mxu0 0.0
    %785 = vmatprep.subr.mxu0 0.0
    %786 = vmatpush1.msra.mxu0 0.0
    %787 = vmatprep.subr.mxu0 0.0
    %788 = vmatpush1.msra.mxu0 0.0
    %789 = vmatprep.subr.mxu0 0.0
    %790 = vmatpush1.msra.mxu0 0.0
    %791 = vmatprep.subr.mxu0 0.0
    %792 = vmatpush1.msra.mxu0 0.0
    %793 = vmatprep.subr.mxu0 0.0
    %794 = vmatpush1.msra.mxu0 0.0
    %795 = vmatprep.subr.mxu0 0.0
    %796 = vmatpush1.msra.mxu0 0.0
    %797 = vmatprep.subr.mxu0 0.0
    %798 = vmatpush1.msra.mxu0 0.0
    %799 = vmatprep.subr.mxu0 0.0
    %800 = vmatpush1.msra.mxu0 0.0
    %801 = vmatprep.subr.mxu0 0.0
    %802 = vmatpush1.msra.mxu0 0.0
    %803 = vmatprep.subr.mxu0 0.0
    %804 = vmatpush1.msra.mxu0 0.0
    %805 = vmatprep.subr.mxu0 0.0
    %806 = vmatpush1.msra.mxu0 0.0
    %807 = vmatprep.subr.mxu0 0.0
    %808 = vmatpush1.msra.mxu0 0.0
    %809 = vmatprep.subr.mxu0 0.0
    %810 = vmatpush1.msra.mxu0 0.0
    %811 = vmatprep.subr.mxu0 0.0
    %812 = vmatpush1.msra.mxu0 0.0
    %813 = vmatprep.subr.mxu0 0.0
    %814 = vmatpush1.msra.mxu0 0.0
    %815 = vmatprep.subr.mxu0 0.0
    %816 = vmatpush1.msra.mxu0 0.0
    %817 = vmatprep.subr.mxu0 0.0
    %818 = vmatpush1.msra.mxu0 0.0
    %819 = vmatprep.subr.mxu0 0.0
    %820 = vmatpush1.msra.mxu0 0.0
    %821 = vmatprep.subr.mxu0 0.0
    %822 = vmatpush1.msra.mxu0 0.0
    %823 = vmatprep.subr.mxu0 0.0
    %824 = vmatpush1.msra.mxu0 0.0
    %825 = vmatprep.subr.mxu0 0.0
    %826 = vmatpush1.msra.mxu0 0.0
    %827 = vmatprep.subr.mxu0 0.0
    %828 = vmatpush1.msra.mxu0 0.0
    %829 = vmatprep.subr.mxu0 0.0
    %830 = vmatpush1.msra.mxu0 0.0
    %831 = vmatprep.subr.mxu0 0.0
    %832 = vmatpush1.msra.mxu0 0.0
    %833 = vmatprep.subr.mxu0 0.0
    %834 = vmatpush1.msra.mxu0 0.0
    %835 = vmatprep.mubr.f32.mxu0 0.0
    %v836 = vand.u32 %v41, 4294901760
    %v837 = vsub.f32 %v41, %v836
    %v838 = vand.u32 %v837, 4294901760
    %839 = vmatmul.mubr.f32.gmra.mrb[0].mxu0 %v838
    %v840 = vpop.f32.mrb[0].mxu0
    %v841 = vadd.f32 %v639, %v840
    %v842 = vpop.f32.mrb[0].mxu0
    %v843 = vadd.f32 %v641, %v842
    %844 = vmatprep.mubr.f32.mxu0 0.0
    %v845 = vand.u32 %v44, 4294901760
    %v846 = vsub.f32 %v44, %v845
    %v847 = vand.u32 %v846, 4294901760
    %848 = vmatmul.mubr.f32.gmra.mrb[0].mxu0 %v847
    %v849 = vpop.f32.mrb[0].mxu0
    %v850 = vadd.f32 %v647, %v849
    %v851 = vpop.f32.mrb[0].mxu0
    %v852 = vadd.f32 %v649, %v851
    %853 = vmatprep.mubr.f32.mxu0 0.0
    %v854 = vand.u32 %v47, 4294901760
    %v855 = vsub.f32 %v47, %v854
    %v856 = vand.u32 %v855, 4294901760
    %857 = vmatmul.mubr.f32.gmra.mrb[0].mxu0 %v856
    %v858 = vpop.f32.mrb[0].mxu0
    %v859 = vadd.f32 %v655, %v858
    %v860 = vpop.f32.mrb[0].mxu0
    %v861 = vadd.f32 %v657, %v860
    %862 = vmatprep.mubr.f32.mxu0 0.0
    %v863 = vand.u32 %v50, 4294901760
    %v864 = vsub.f32 %v50, %v863
    %v865 = vand.u32 %v864, 4294901760
    %866 = vmatmul.mubr.f32.gmra.mrb[0].mxu0 %v865
    %v867 = vpop.f32.mrb[0].mxu0
    %v868 = vadd.f32 %v663, %v867
    %v869 = vpop.f32.mrb[0].mxu0
    %v870 = vadd.f32 %v665, %v869
    %871 = vmatprep.mubr.f32.mxu0 0.0
    %v872 = vand.u32 %v53, 4294901760
    %v873 = vsub.f32 %v53, %v872
    %v874 = vand.u32 %v873, 4294901760
    %875 = vmatmul.mubr.f32.gmra.mrb[0].mxu0 %v874
    %v876 = vpop.f32.mrb[0].mxu0
    %v877 = vadd.f32 %v671, %v876
    %v878 = vpop.f32.mrb[0].mxu0
    %v879 = vadd.f32 %v673, %v878
    %880 = vmatprep.mubr.f32.mxu0 0.0
    %v881 = vand.u32 %v56, 4294901760
    %v882 = vsub.f32 %v56, %v881
    %v883 = vand.u32 %v882, 4294901760
    %884 = vmatmul.mubr.f32.gmra.mrb[0].mxu0 %v883
    %v885 = vpop.f32.mrb[0].mxu0
    %v886 = vadd.f32 %v679, %v885
    %v887 = vpop.f32.mrb[0].mxu0
    %v888 = vadd.f32 %v681, %v887
    %889 = vmatprep.mubr.f32.mxu0 0.0
    %v890 = vand.u32 %v59, 4294901760
    %v891 = vsub.f32 %v59, %v890
    %v892 = vand.u32 %v891, 4294901760
    %893 = vmatmul.mubr.f32.gmra.mrb[0].mxu0 %v892
    %v894 = vpop.f32.mrb[0].mxu0
    %v895 = vadd.f32 %v687, %v894
    %v896 = vpop.f32.mrb[0].mxu0
    %v897 = vadd.f32 %v689, %v896
    %898 = vmatprep.mubr.f32.mxu0 0.0
    %v899 = vand.u32 %v62, 4294901760
    %v900 = vsub.f32 %v62, %v899
    %v901 = vand.u32 %v900, 4294901760
    %902 = vmatmul.mubr.f32.gmra.mrb[0].mxu0 %v901
    %v903 = vpop.f32.mrb[0].mxu0
    %v904 = vadd.f32 %v695, %v903
    %v905 = vpop.f32.mrb[0].mxu0
    %v906 = vadd.f32 %v697, %v905
    %907 = vmatprep.mubr.f32.mxu0 0.0
    %v908 = vand.u32 %v65, 4294901760
    %v909 = vsub.f32 %v65, %v908
    %v910 = vand.u32 %v909, 4294901760
    %911 = vmatmul.mubr.f32.gmra.mrb[0].mxu0 %v910
    %v912 = vpop.f32.mrb[0].mxu0
    %v913 = vadd.f32 %v703, %v912
    %v914 = vpop.f32.mrb[0].mxu0
    %v915 = vadd.f32 %v705, %v914
    %916 = vmatprep.mubr.f32.mxu0 0.0
    %v917 = vand.u32 %v68, 4294901760
    %v918 = vsub.f32 %v68, %v917
    %v919 = vand.u32 %v918, 4294901760
    %920 = vmatmul.mubr.f32.gmra.mrb[0].mxu0 %v919
    %v921 = vpop.f32.mrb[0].mxu0
    %v922 = vadd.f32 %v711, %v921
    %v923 = vpop.f32.mrb[0].mxu0
    %v924 = vadd.f32 %v713, %v923
    %925 = vmatprep.mubr.f32.mxu0 0.0
    %v926 = vand.u32 %v71, 4294901760
    %v927 = vsub.f32 %v71, %v926
    %v928 = vand.u32 %v927, 4294901760
    %929 = vmatmul.mubr.f32.gmra.mrb[0].mxu0 %v928
    %v930 = vpop.f32.mrb[0].mxu0
    %v931 = vadd.f32 %v719, %v930
    %v932 = vpop.f32.mrb[0].mxu0
    %v933 = vadd.f32 %v721, %v932
    %934 = vmatprep.mubr.f32.mxu0 0.0
    %v935 = vand.u32 %v74, 4294901760
    %v936 = vsub.f32 %v74, %v935
    %v937 = vand.u32 %v936, 4294901760
    %938 = vmatmul.mubr.f32.gmra.mrb[0].mxu0 %v937
    %v939 = vpop.f32.mrb[0].mxu0
    %v940 = vadd.f32 %v727, %v939
    %v941 = vpop.f32.mrb[0].mxu0
    %v942 = vadd.f32 %v729, %v941
    %943 = vmatprep.mubr.f32.mxu0 0.0
    %v944 = vand.u32 %v77, 4294901760
    %v945 = vsub.f32 %v77, %v944
    %v946 = vand.u32 %v945, 4294901760
    %947 = vmatmul.mubr.f32.gmra.mrb[0].mxu0 %v946
    %v948 = vpop.f32.mrb[0].mxu0
    %v949 = vadd.f32 %v735, %v948
    %v950 = vpop.f32.mrb[0].mxu0
    %v951 = vadd.f32 %v737, %v950
    %952 = vmatprep.mubr.f32.mxu0 0.0
    %v953 = vand.u32 %v80, 4294901760
    %v954 = vsub.f32 %v80, %v953
    %v955 = vand.u32 %v954, 4294901760
    %956 = vmatmul.mubr.f32.gmra.mrb[0].mxu0 %v955
    %v957 = vpop.f32.mrb[0].mxu0
    %v958 = vadd.f32 %v743, %v957
    %v959 = vpop.f32.mrb[0].mxu0
    %v960 = vadd.f32 %v745, %v959
    %961 = vmatprep.mubr.f32.mxu0 0.0
    %v962 = vand.u32 %v83, 4294901760
    %v963 = vsub.f32 %v83, %v962
    %v964 = vand.u32 %v963, 4294901760
    %965 = vmatmul.mubr.f32.gmra.mrb[0].mxu0 %v964
    %v966 = vpop.f32.mrb[0].mxu0
    %v967 = vadd.f32 %v751, %v966
    %v968 = vpop.f32.mrb[0].mxu0
    %v969 = vadd.f32 %v753, %v968
    %970 = vmatprep.mubr.f32.mxu0 0.0
    %v971 = vand.u32 %v86, 4294901760
    %v972 = vsub.f32 %v86, %v971
    %v973 = vand.u32 %v972, 4294901760
    %974 = vmatmul.mubr.f32.gmra.mrb[0].mxu0 %v973
    %v975 = vpop.f32.mrb[0].mxu0
    %v976 = vadd.f32 %v759, %v975
    %v977 = vpop.f32.mrb[0].mxu0
    %v978 = vadd.f32 %v761, %v977
    %979 = vdwg.mxu0
    %v980 = vand.u32 %v32, 4294901760
    %v981 = vsub.f32 %v32, %v980
    %v982 = vand.u32 %v981, 4294901760
    %983 = vmatprep.subr.mxu0 %v982
    %v984 = vand.u32 %v31, 4294901760
    %v985 = vsub.f32 %v31, %v984
    %v986 = vand.u32 %v985, 4294901760
    %987 = vmatpush1.msra.mxu0 %v986
    %v988 = vand.u32 %v34, 4294901760
    %v989 = vsub.f32 %v34, %v988
    %v990 = vand.u32 %v989, 4294901760
    %991 = vmatprep.subr.mxu0 %v990
    %v992 = vand.u32 %v33, 4294901760
    %v993 = vsub.f32 %v33, %v992
    %v994 = vand.u32 %v993, 4294901760
    %995 = vmatpush1.msra.mxu0 %v994
    %v996 = vand.u32 %v36, 4294901760
    %v997 = vsub.f32 %v36, %v996
    %v998 = vand.u32 %v997, 4294901760
    %999 = vmatprep.subr.mxu0 %v998
    %v1000 = vand.u32 %v35, 4294901760
    %v1001 = vsub.f32 %v35, %v1000
    %v1002 = vand.u32 %v1001, 4294901760
    %1003 = vmatpush1.msra.mxu0 %v1002
    %v1004 = vand.u32 %v38, 4294901760
    %v1005 = vsub.f32 %v38, %v1004
    %v1006 = vand.u32 %v1005, 4294901760
    %1007 = vmatprep.subr.mxu0 %v1006
    %v1008 = vand.u32 %v37, 4294901760
    %v1009 = vsub.f32 %v37, %v1008
    %v1010 = vand.u32 %v1009, 4294901760
    %1011 = vmatpush1.msra.mxu0 %v1010
    %1012 = vmatprep.subr.mxu0 0.0
    %1013 = vmatpush1.msra.mxu0 0.0
    %1014 = vmatprep.subr.mxu0 0.0
    %1015 = vmatpush1.msra.mxu0 0.0
    %1016 = vmatprep.subr.mxu0 0.0
    %1017 = vmatpush1.msra.mxu0 0.0
    %1018 = vmatprep.subr.mxu0 0.0
    %1019 = vmatpush1.msra.mxu0 0.0
    %1020 = vmatprep.subr.mxu0 0.0
    %1021 = vmatpush1.msra.mxu0 0.0
    %1022 = vmatprep.subr.mxu0 0.0
    %1023 = vmatpush1.msra.mxu0 0.0
    %1024 = vmatprep.subr.mxu0 0.0
    %1025 = vmatpush1.msra.mxu0 0.0
    %1026 = vmatprep.subr.mxu0 0.0
    %1027 = vmatpush1.msra.mxu0 0.0
    %1028 = vmatprep.subr.mxu0 0.0
    %1029 = vmatpush1.msra.mxu0 0.0
    %1030 = vmatprep.subr.mxu0 0.0
    %1031 = vmatpush1.msra.mxu0 0.0
    %1032 = vmatprep.subr.mxu0 0.0
    %1033 = vmatpush1.msra.mxu0 0.0
    %1034 = vmatprep.subr.mxu0 0.0
    %1035 = vmatpush1.msra.mxu0 0.0
    %1036 = vmatprep.subr.mxu0 0.0
    %1037 = vmatpush1.msra.mxu0 0.0
    %1038 = vmatprep.subr.mxu0 0.0
    %1039 = vmatpush1.msra.mxu0 0.0
    %1040 = vmatprep.subr.mxu0 0.0
    %1041 = vmatpush1.msra.mxu0 0.0
    %1042 = vmatprep.subr.mxu0 0.0
    %1043 = vmatpush1.msra.mxu0 0.0
    %1044 = vmatprep.subr.mxu0 0.0
    %1045 = vmatpush1.msra.mxu0 0.0
    %1046 = vmatprep.subr.mxu0 0.0
    %1047 = vmatpush1.msra.mxu0 0.0
    %1048 = vmatprep.subr.mxu0 0.0
    %1049 = vmatpush1.msra.mxu0 0.0
    %1050 = vmatprep.subr.mxu0 0.0
    %1051 = vmatpush1.msra.mxu0 0.0
    %1052 = vmatprep.subr.mxu0 0.0
    %1053 = vmatpush1.msra.mxu0 0.0
    %1054 = vmatprep.subr.mxu0 0.0
    %1055 = vmatpush1.msra.mxu0 0.0
    %1056 = vmatprep.subr.mxu0 0.0
    %1057 = vmatpush1.msra.mxu0 0.0
    %1058 = vmatprep.subr.mxu0 0.0
    %1059 = vmatpush1.msra.mxu0 0.0
    %1060 = vmatprep.subr.mxu0 0.0
    %1061 = vmatpush1.msra.mxu0 0.0
    %1062 = vmatprep.subr.mxu0 0.0
    %1063 = vmatpush1.msra.mxu0 0.0
    %1064 = vmatprep.subr.mxu0 0.0
    %1065 = vmatpush1.msra.mxu0 0.0
    %1066 = vmatprep.subr.mxu0 0.0
    %1067 = vmatpush1.msra.mxu0 0.0
    %1068 = vmatprep.mubr.f32.mxu0 0.0
    %v1069 = vand.u32 %v41, 4294901760
    %1070 = vmatmul.mubr.f32.gmra.mrb[0].mxu0 %v1069
    %v1071 = vpop.f32.mrb[0].mxu0
    %v1072 = vadd.f32 %v841, %v1071
    %v1073 = vpop.f32.mrb[0].mxu0
    %v1074 = vadd.f32 %v843, %v1073
    %1075 = vmatprep.mubr.f32.mxu0 0.0
    %v1076 = vand.u32 %v44, 4294901760
    %1077 = vmatmul.mubr.f32.gmra.mrb[0].mxu0 %v1076
    %v1078 = vpop.f32.mrb[0].mxu0
    %v1079 = vadd.f32 %v850, %v1078
    %v1080 = vpop.f32.mrb[0].mxu0
    %v1081 = vadd.f32 %v852, %v1080
    %1082 = vmatprep.mubr.f32.mxu0 0.0
    %v1083 = vand.u32 %v47, 4294901760
    %1084 = vmatmul.mubr.f32.gmra.mrb[0].mxu0 %v1083
    %v1085 = vpop.f32.mrb[0].mxu0
    %v1086 = vadd.f32 %v859, %v1085
    %v1087 = vpop.f32.mrb[0].mxu0
    %v1088 = vadd.f32 %v861, %v1087
    %1089 = vmatprep.mubr.f32.mxu0 0.0
    %v1090 = vand.u32 %v50, 4294901760
    %1091 = vmatmul.mubr.f32.gmra.mrb[0].mxu0 %v1090
    %v1092 = vpop.f32.mrb[0].mxu0
    %v1093 = vadd.f32 %v868, %v1092
    %v1094 = vpop.f32.mrb[0].mxu0
    %v1095 = vadd.f32 %v870, %v1094
    %1096 = vmatprep.mubr.f32.mxu0 0.0
    %v1097 = vand.u32 %v53, 4294901760
    %1098 = vmatmul.mubr.f32.gmra.mrb[0].mxu0 %v1097
    %v1099 = vpop.f32.mrb[0].mxu0
    %v1100 = vadd.f32 %v877, %v1099
    %v1101 = vpop.f32.mrb[0].mxu0
    %v1102 = vadd.f32 %v879, %v1101
    %1103 = vmatprep.mubr.f32.mxu0 0.0
    %v1104 = vand.u32 %v56, 4294901760
    %1105 = vmatmul.mubr.f32.gmra.mrb[0].mxu0 %v1104
    %v1106 = vpop.f32.mrb[0].mxu0
    %v1107 = vadd.f32 %v886, %v1106
    %v1108 = vpop.f32.mrb[0].mxu0
    %v1109 = vadd.f32 %v888, %v1108
    %1110 = vmatprep.mubr.f32.mxu0 0.0
    %v1111 = vand.u32 %v59, 4294901760
    %1112 = vmatmul.mubr.f32.gmra.mrb[0].mxu0 %v1111
    %v1113 = vpop.f32.mrb[0].mxu0
    %v1114 = vadd.f32 %v895, %v1113
    %v1115 = vpop.f32.mrb[0].mxu0
    %v1116 = vadd.f32 %v897, %v1115
    %1117 = vmatprep.mubr.f32.mxu0 0.0
    %v1118 = vand.u32 %v62, 4294901760
    %1119 = vmatmul.mubr.f32.gmra.mrb[0].mxu0 %v1118
    %v1120 = vpop.f32.mrb[0].mxu0
    %v1121 = vadd.f32 %v904, %v1120
    %v1122 = vpop.f32.mrb[0].mxu0
    %v1123 = vadd.f32 %v906, %v1122
    %1124 = vmatprep.mubr.f32.mxu0 0.0
    %v1125 = vand.u32 %v65, 4294901760
    %1126 = vmatmul.mubr.f32.gmra.mrb[0].mxu0 %v1125
    %v1127 = vpop.f32.mrb[0].mxu0
    %v1128 = vadd.f32 %v913, %v1127
    %v1129 = vpop.f32.mrb[0].mxu0
    %v1130 = vadd.f32 %v915, %v1129
    %1131 = vmatprep.mubr.f32.mxu0 0.0
    %v1132 = vand.u32 %v68, 4294901760
    %1133 = vmatmul.mubr.f32.gmra.mrb[0].mxu0 %v1132
    %v1134 = vpop.f32.mrb[0].mxu0
    %v1135 = vadd.f32 %v922, %v1134
    %v1136 = vpop.f32.mrb[0].mxu0
    %v1137 = vadd.f32 %v924, %v1136
    %1138 = vmatprep.mubr.f32.mxu0 0.0
    %v1139 = vand.u32 %v71, 4294901760
    %1140 = vmatmul.mubr.f32.gmra.mrb[0].mxu0 %v1139
    %v1141 = vpop.f32.mrb[0].mxu0
    %v1142 = vadd.f32 %v931, %v1141
    %v1143 = vpop.f32.mrb[0].mxu0
    %v1144 = vadd.f32 %v933, %v1143
    %1145 = vmatprep.mubr.f32.mxu0 0.0
    %v1146 = vand.u32 %v74, 4294901760
    %1147 = vmatmul.mubr.f32.gmra.mrb[0].mxu0 %v1146
    %v1148 = vpop.f32.mrb[0].mxu0
    %v1149 = vadd.f32 %v940, %v1148
    %v1150 = vpop.f32.mrb[0].mxu0
    %v1151 = vadd.f32 %v942, %v1150
    %1152 = vmatprep.mubr.f32.mxu0 0.0
    %v1153 = vand.u32 %v77, 4294901760
    %1154 = vmatmul.mubr.f32.gmra.mrb[0].mxu0 %v1153
    %v1155 = vpop.f32.mrb[0].mxu0
    %v1156 = vadd.f32 %v949, %v1155
    %v1157 = vpop.f32.mrb[0].mxu0
    %v1158 = vadd.f32 %v951, %v1157
    %1159 = vmatprep.mubr.f32.mxu0 0.0
    %v1160 = vand.u32 %v80, 4294901760
    %1161 = vmatmul.mubr.f32.gmra.mrb[0].mxu0 %v1160
    %v1162 = vpop.f32.mrb[0].mxu0
    %v1163 = vadd.f32 %v958, %v1162
    %v1164 = vpop.f32.mrb[0].mxu0
    %v1165 = vadd.f32 %v960, %v1164
    %1166 = vmatprep.mubr.f32.mxu0 0.0
    %v1167 = vand.u32 %v83, 4294901760
    %1168 = vmatmul.mubr.f32.gmra.mrb[0].mxu0 %v1167
    %v1169 = vpop.f32.mrb[0].mxu0
    %v1170 = vadd.f32 %v967, %v1169
    %v1171 = vpop.f32.mrb[0].mxu0
    %v1172 = vadd.f32 %v969, %v1171
    %1173 = vmatprep.mubr.f32.mxu0 0.0
    %v1174 = vand.u32 %v86, 4294901760
    %1175 = vmatmul.mubr.f32.gmra.mrb[0].mxu0 %v1174
    %v1176 = vpop.f32.mrb[0].mxu0
    %v1177 = vadd.f32 %v976, %v1176
    %v1178 = vpop.f32.mrb[0].mxu0
    %v1179 = vadd.f32 %v978, %v1178
    %1180 = vdwg.mxu0
    %v1181 = vand.u32 %v32, 4294901760
    %1182 = vmatprep.subr.mxu0 %v1181
    %v1183 = vand.u32 %v31, 4294901760
    %1184 = vmatpush1.msra.mxu0 %v1183
    %v1185 = vand.u32 %v34, 4294901760
    %1186 = vmatprep.subr.mxu0 %v1185
    %v1187 = vand.u32 %v33, 4294901760
    %1188 = vmatpush1.msra.mxu0 %v1187
    %v1189 = vand.u32 %v36, 4294901760
    %1190 = vmatprep.subr.mxu0 %v1189
    %v1191 = vand.u32 %v35, 4294901760
    %1192 = vmatpush1.msra.mxu0 %v1191
    %v1193 = vand.u32 %v38, 4294901760
    %1194 = vmatprep.subr.mxu0 %v1193
    %v1195 = vand.u32 %v37, 4294901760
    %1196 = vmatpush1.msra.mxu0 %v1195
    %1197 = vmatprep.subr.mxu0 0.0
    %1198 = vmatpush1.msra.mxu0 0.0
    %1199 = vmatprep.subr.mxu0 0.0
    %1200 = vmatpush1.msra.mxu0 0.0
    %1201 = vmatprep.subr.mxu0 0.0
    %1202 = vmatpush1.msra.mxu0 0.0
    %1203 = vmatprep.subr.mxu0 0.0
    %1204 = vmatpush1.msra.mxu0 0.0
    %1205 = vmatprep.subr.mxu0 0.0
    %1206 = vmatpush1.msra.mxu0 0.0
    %1207 = vmatprep.subr.mxu0 0.0
    %1208 = vmatpush1.msra.mxu0 0.0
    %1209 = vmatprep.subr.mxu0 0.0
    %1210 = vmatpush1.msra.mxu0 0.0
    %1211 = vmatprep.subr.mxu0 0.0
    %1212 = vmatpush1.msra.mxu0 0.0
    %1213 = vmatprep.subr.mxu0 0.0
    %1214 = vmatpush1.msra.mxu0 0.0
    %1215 = vmatprep.subr.mxu0 0.0
    %1216 = vmatpush1.msra.mxu0 0.0
    %1217 = vmatprep.subr.mxu0 0.0
    %1218 = vmatpush1.msra.mxu0 0.0
    %1219 = vmatprep.subr.mxu0 0.0
    %1220 = vmatpush1.msra.mxu0 0.0
    %1221 = vmatprep.subr.mxu0 0.0
    %1222 = vmatpush1.msra.mxu0 0.0
    %1223 = vmatprep.subr.mxu0 0.0
    %1224 = vmatpush1.msra.mxu0 0.0
    %1225 = vmatprep.subr.mxu0 0.0
    %1226 = vmatpush1.msra.mxu0 0.0
    %1227 = vmatprep.subr.mxu0 0.0
    %1228 = vmatpush1.msra.mxu0 0.0
    %1229 = vmatprep.subr.mxu0 0.0
    %1230 = vmatpush1.msra.mxu0 0.0
    %1231 = vmatprep.subr.mxu0 0.0
    %1232 = vmatpush1.msra.mxu0 0.0
    %1233 = vmatprep.subr.mxu0 0.0
    %1234 = vmatpush1.msra.mxu0 0.0
    %1235 = vmatprep.subr.mxu0 0.0
    %1236 = vmatpush1.msra.mxu0 0.0
    %1237 = vmatprep.subr.mxu0 0.0
    %1238 = vmatpush1.msra.mxu0 0.0
    %1239 = vmatprep.subr.mxu0 0.0
    %1240 = vmatpush1.msra.mxu0 0.0
    %1241 = vmatprep.subr.mxu0 0.0
    %1242 = vmatpush1.msra.mxu0 0.0
    %1243 = vmatprep.subr.mxu0 0.0
    %1244 = vmatpush1.msra.mxu0 0.0
    %1245 = vmatprep.subr.mxu0 0.0
    %1246 = vmatpush1.msra.mxu0 0.0
    %1247 = vmatprep.subr.mxu0 0.0
    %1248 = vmatpush1.msra.mxu0 0.0
    %1249 = vmatprep.subr.mxu0 0.0
    %1250 = vmatpush1.msra.mxu0 0.0
    %1251 = vmatprep.subr.mxu0 0.0
    %1252 = vmatpush1.msra.mxu0 0.0
    %1253 = vmatprep.mubr.f32.mxu0 0.0
    %v1254 = vand.u32 %v41, 4294901760
    %1255 = vmatmul.mubr.f32.gmra.mrb[0].mxu0 %v1254
    %v1256 = vpop.f32.mrb[0].mxu0
    %v1257 = vadd.f32 %v1072, %v1256
    %v1258 = vpop.f32.mrb[0].mxu0
    %v1259 = vadd.f32 %v1074, %v1258
    %1260 = vmatprep.mubr.f32.mxu0 0.0
    %v1261 = vand.u32 %v44, 4294901760
    %1262 = vmatmul.mubr.f32.gmra.mrb[0].mxu0 %v1261
    %v1263 = vpop.f32.mrb[0].mxu0
    %v1264 = vadd.f32 %v1079, %v1263
    %v1265 = vpop.f32.mrb[0].mxu0
    %v1266 = vadd.f32 %v1081, %v1265
    %1267 = vmatprep.mubr.f32.mxu0 0.0
    %v1268 = vand.u32 %v47, 4294901760
    %1269 = vmatmul.mubr.f32.gmra.mrb[0].mxu0 %v1268
    %v1270 = vpop.f32.mrb[0].mxu0
    %v1271 = vadd.f32 %v1086, %v1270
    %v1272 = vpop.f32.mrb[0].mxu0
    %v1273 = vadd.f32 %v1088, %v1272
    %1274 = vmatprep.mubr.f32.mxu0 0.0
    %v1275 = vand.u32 %v50, 4294901760
    %1276 = vmatmul.mubr.f32.gmra.mrb[0].mxu0 %v1275
    %v1277 = vpop.f32.mrb[0].mxu0
    %v1278 = vadd.f32 %v1093, %v1277
    %v1279 = vpop.f32.mrb[0].mxu0
    %v1280 = vadd.f32 %v1095, %v1279
    %1281 = vmatprep.mubr.f32.mxu0 0.0
    %v1282 = vand.u32 %v53, 4294901760
    %1283 = vmatmul.mubr.f32.gmra.mrb[0].mxu0 %v1282
    %v1284 = vpop.f32.mrb[0].mxu0
    %v1285 = vadd.f32 %v1100, %v1284
    %v1286 = vpop.f32.mrb[0].mxu0
    %v1287 = vadd.f32 %v1102, %v1286
    %1288 = vmatprep.mubr.f32.mxu0 0.0
    %v1289 = vand.u32 %v56, 4294901760
    %1290 = vmatmul.mubr.f32.gmra.mrb[0].mxu0 %v1289
    %v1291 = vpop.f32.mrb[0].mxu0
    %v1292 = vadd.f32 %v1107, %v1291
    %v1293 = vpop.f32.mrb[0].mxu0
    %v1294 = vadd.f32 %v1109, %v1293
    %1295 = vmatprep.mubr.f32.mxu0 0.0
    %v1296 = vand.u32 %v59, 4294901760
    %1297 = vmatmul.mubr.f32.gmra.mrb[0].mxu0 %v1296
    %v1298 = vpop.f32.mrb[0].mxu0
    %v1299 = vadd.f32 %v1114, %v1298
    %v1300 = vpop.f32.mrb[0].mxu0
    %v1301 = vadd.f32 %v1116, %v1300
    %1302 = vmatprep.mubr.f32.mxu0 0.0
    %v1303 = vand.u32 %v62, 4294901760
    %1304 = vmatmul.mubr.f32.gmra.mrb[0].mxu0 %v1303
    %v1305 = vpop.f32.mrb[0].mxu0
    %v1306 = vadd.f32 %v1121, %v1305
    %v1307 = vpop.f32.mrb[0].mxu0
    %v1308 = vadd.f32 %v1123, %v1307
    %1309 = vmatprep.mubr.f32.mxu0 0.0
    %v1310 = vand.u32 %v65, 4294901760
    %1311 = vmatmul.mubr.f32.gmra.mrb[0].mxu0 %v1310
    %v1312 = vpop.f32.mrb[0].mxu0
    %v1313 = vadd.f32 %v1128, %v1312
    %v1314 = vpop.f32.mrb[0].mxu0
    %v1315 = vadd.f32 %v1130, %v1314
    %1316 = vmatprep.mubr.f32.mxu0 0.0
    %v1317 = vand.u32 %v68, 4294901760
    %1318 = vmatmul.mubr.f32.gmra.mrb[0].mxu0 %v1317
    %v1319 = vpop.f32.mrb[0].mxu0
    %v1320 = vadd.f32 %v1135, %v1319
    %v1321 = vpop.f32.mrb[0].mxu0
    %v1322 = vadd.f32 %v1137, %v1321
    %1323 = vmatprep.mubr.f32.mxu0 0.0
    %v1324 = vand.u32 %v71, 4294901760
    %1325 = vmatmul.mubr.f32.gmra.mrb[0].mxu0 %v1324
    %v1326 = vpop.f32.mrb[0].mxu0
    %v1327 = vadd.f32 %v1142, %v1326
    %v1328 = vpop.f32.mrb[0].mxu0
    %v1329 = vadd.f32 %v1144, %v1328
    %1330 = vmatprep.mubr.f32.mxu0 0.0
    %v1331 = vand.u32 %v74, 4294901760
    %1332 = vmatmul.mubr.f32.gmra.mrb[0].mxu0 %v1331
    %v1333 = vpop.f32.mrb[0].mxu0
    %v1334 = vadd.f32 %v1149, %v1333
    %v1335 = vpop.f32.mrb[0].mxu0
    %v1336 = vadd.f32 %v1151, %v1335
    %1337 = vmatprep.mubr.f32.mxu0 0.0
    %v1338 = vand.u32 %v77, 4294901760
    %1339 = vmatmul.mubr.f32.gmra.mrb[0].mxu0 %v1338
    %v1340 = vpop.f32.mrb[0].mxu0
    %v1341 = vadd.f32 %v1156, %v1340
    %v1342 = vpop.f32.mrb[0].mxu0
    %v1343 = vadd.f32 %v1158, %v1342
    %1344 = vmatprep.mubr.f32.mxu0 0.0
    %v1345 = vand.u32 %v80, 4294901760
    %1346 = vmatmul.mubr.f32.gmra.mrb[0].mxu0 %v1345
    %v1347 = vpop.f32.mrb[0].mxu0
    %v1348 = vadd.f32 %v1163, %v1347
    %v1349 = vpop.f32.mrb[0].mxu0
    %v1350 = vadd.f32 %v1165, %v1349
    %1351 = vmatprep.mubr.f32.mxu0 0.0
    %v1352 = vand.u32 %v83, 4294901760
    %1353 = vmatmul.mubr.f32.gmra.mrb[0].mxu0 %v1352
    %v1354 = vpop.f32.mrb[0].mxu0
    %v1355 = vadd.f32 %v1170, %v1354
    %v1356 = vpop.f32.mrb[0].mxu0
    %v1357 = vadd.f32 %v1172, %v1356
    %1358 = vmatprep.mubr.f32.mxu0 0.0
    %v1359 = vand.u32 %v86, 4294901760
    %1360 = vmatmul.mubr.f32.gmra.mrb[0].mxu0 %v1359
    %v1361 = vpop.f32.mrb[0].mxu0
    %v1362 = vadd.f32 %v1177, %v1361
    %v1363 = vpop.f32.mrb[0].mxu0
    %v1364 = vadd.f32 %v1179, %v1363
    %1365 = vdwg.mxu0
    %v1366 = vmul.f32 %v1259, %v15
    %v1367 = vmul.f32 %v1266, %v16
    %v1368 = vmul.f32 %v1273, %v17
    %v1369 = vmul.f32 %v1280, %v18
    %v1370 = vmul.f32 %v1287, %v19
    %v1371 = vmul.f32 %v1294, %v20
    %v1372 = vmul.f32 %v1301, %v21
    %v1373 = vmul.f32 %v1308, %v22
    %v1374 = vmul.f32 %v1315, %v23
    %v1375 = vmul.f32 %v1322, %v24
    %v1376 = vmul.f32 %v1329, %v25
    %v1377 = vmul.f32 %v1336, %v26
    %v1378 = vmul.f32 %v1343, %v27
    %v1379 = vmul.f32 %v1350, %v28
    %v1380 = vmul.f32 %v1357, %v29
    %v1381 = vmul.f32 %v1364, %v30
    %v1382 = vsel %vm39, %v1366, 0.0
    %1383 = vadd.xlane.f32.xlu0 %v1382
    %v1384 = vpop.xlane.xlu0 %1383
    %v1385 = vsel %vm39, %v1367, 0.0
    %1386 = vadd.xlane.f32.xlu0 %v1385
    %v1387 = vpop.xlane.xlu0 %1386
    %v1388 = vsel %vm39, %v1368, 0.0
    %1389 = vadd.xlane.f32.xlu0 %v1388
    %v1390 = vpop.xlane.xlu0 %1389
    %v1391 = vsel %vm39, %v1369, 0.0
    %1392 = vadd.xlane.f32.xlu0 %v1391
    %v1393 = vpop.xlane.xlu0 %1392
    %v1394 = vsel %vm39, %v1370, 0.0
    %1395 = vadd.xlane.f32.xlu0 %v1394
    %v1396 = vpop.xlane.xlu0 %1395
    %v1397 = vsel %vm39, %v1371, 0.0
    %1398 = vadd.xlane.f32.xlu0 %v1397
    %v1399 = vpop.xlane.xlu0 %1398
    %v1400 = vsel %vm39, %v1372, 0.0
    %1401 = vadd.xlane.f32.xlu0 %v1400
    %v1402 = vpop.xlane.xlu0 %1401
    %v1403 = vsel %vm39, %v1373, 0.0
    %1404 = vadd.xlane.f32.xlu0 %v1403
    %v1405 = vpop.xlane.xlu0 %1404
    %v1406 = vsel %vm39, %v1374, 0.0
    %1407 = vadd.xlane.f32.xlu0 %v1406
    %v1408 = vpop.xlane.xlu0 %1407
    %v1409 = vsel %vm39, %v1375, 0.0
    %1410 = vadd.xlane.f32.xlu0 %v1409
    %v1411 = vpop.xlane.xlu0 %1410
    %v1412 = vsel %vm39, %v1376, 0.0
    %1413 = vadd.xlane.f32.xlu0 %v1412
    %v1414 = vpop.xlane.xlu0 %1413
    %v1415 = vsel %vm39, %v1377, 0.0
    %1416 = vadd.xlane.f32.xlu0 %v1415
    %v1417 = vpop.xlane.xlu0 %1416
    %v1418 = vsel %vm39, %v1378, 0.0
    %1419 = vadd.xlane.f32.xlu0 %v1418
    %v1420 = vpop.xlane.xlu0 %1419
    %v1421 = vsel %vm39, %v1379, 0.0
    %1422 = vadd.xlane.f32.xlu0 %v1421
    %v1423 = vpop.xlane.xlu0 %1422
    %v1424 = vsel %vm39, %v1380, 0.0
    %1425 = vadd.xlane.f32.xlu0 %v1424
    %v1426 = vpop.xlane.xlu0 %1425
    %v1427 = vsel %vm39, %v1381, 0.0
    %1428 = vadd.xlane.f32.xlu0 %v1427
    %v1429 = vpop.xlane.xlu0 %1428
    %v1430 = vld [vmem:[%s2] sm:$0x1]
    %v1432 = vlaneseq
    %v1433 = vshrl.u32 %v1432, 7
    %v1434 = vsub.s32 0, %v1433
    %v1435 = vrot.slane %v1430, %v1434
    %v1437 = vsub.f32 %v1435, %v1257
    %v1438 = vsub.f32 %v1435, %v1264
    %v1439 = vsub.f32 %v1435, %v1271
    %v1440 = vsub.f32 %v1435, %v1278
    %v1441 = vsub.f32 %v1435, %v1285
    %v1442 = vsub.f32 %v1435, %v1292
    %v1443 = vsub.f32 %v1435, %v1299
    %v1444 = vsub.f32 %v1435, %v1306
    %v1445 = vsub.f32 %v1435, %v1313
    %v1446 = vsub.f32 %v1435, %v1320
    %v1447 = vsub.f32 %v1435, %v1327
    %v1448 = vsub.f32 %v1435, %v1334
    %v1449 = vsub.f32 %v1435, %v1341
    %v1450 = vsub.f32 %v1435, %v1348
    %v1451 = vsub.f32 %v1435, %v1355
    %v1452 = vsub.f32 %v1435, %v1362
    %1453 = vmin.xlane.f32.xlu0 %v1437
    %v1454 = vpop.xlane.xlu0 %1453
    %1455 = vmin.xlane.f32.xlu0 %v1438
    %v1456 = vpop.xlane.xlu0 %1455
    %1457 = vmin.xlane.f32.xlu0 %v1439
    %v1458 = vpop.xlane.xlu0 %1457
    %1459 = vmin.xlane.f32.xlu0 %v1440
    %v1460 = vpop.xlane.xlu0 %1459
    %1461 = vmin.xlane.f32.xlu0 %v1441
    %v1462 = vpop.xlane.xlu0 %1461
    %1463 = vmin.xlane.f32.xlu0 %v1442
    %v1464 = vpop.xlane.xlu0 %1463
    %1465 = vmin.xlane.f32.xlu0 %v1443
    %v1466 = vpop.xlane.xlu0 %1465
    %1467 = vmin.xlane.f32.xlu0 %v1444
    %v1468 = vpop.xlane.xlu0 %1467
    %1469 = vmin.xlane.f32.xlu0 %v1445
    %v1470 = vpop.xlane.xlu0 %1469
    %1471 = vmin.xlane.f32.xlu0 %v1446
    %v1472 = vpop.xlane.xlu0 %1471
    %1473 = vmin.xlane.f32.xlu0 %v1447
    %v1474 = vpop.xlane.xlu0 %1473
    %1475 = vmin.xlane.f32.xlu0 %v1448
    %v1476 = vpop.xlane.xlu0 %1475
    %1477 = vmin.xlane.f32.xlu0 %v1449
    %v1478 = vpop.xlane.xlu0 %1477
    %1479 = vmin.xlane.f32.xlu0 %v1450
    %v1480 = vpop.xlane.xlu0 %1479
    %1481 = vmin.xlane.f32.xlu0 %v1451
    %v1482 = vpop.xlane.xlu0 %1481
    %1483 = vmin.xlane.f32.xlu0 %v1452
    %v1484 = vpop.xlane.xlu0 %1483
    %v1485 = vadd.f32 %v1384, %v1454
    %v1486 = vadd.f32 %v1387, %v1456
    %v1487 = vadd.f32 %v1390, %v1458
    %v1488 = vadd.f32 %v1393, %v1460
    %v1489 = vadd.f32 %v1396, %v1462
    %v1490 = vadd.f32 %v1399, %v1464
    %v1491 = vadd.f32 %v1402, %v1466
    %v1492 = vadd.f32 %v1405, %v1468
    %v1493 = vadd.f32 %v1408, %v1470
    %v1494 = vadd.f32 %v1411, %v1472
    %v1495 = vadd.f32 %v1414, %v1474
    %v1496 = vadd.f32 %v1417, %v1476
    %v1497 = vadd.f32 %v1420, %v1478
    %v1498 = vadd.f32 %v1423, %v1480
    %v1499 = vadd.f32 %v1426, %v1482
    %v1500 = vadd.f32 %v1429, %v1484
    %1501 = vxpose.xlu0.b32.start [1/16] %v1485, 128
    %1502 = vxpose.xlu0.b32.cont [2/16] %v1486, 128
    %1503 = vxpose.xlu0.b32.cont [3/16] %v1487, 128
    %1504 = vxpose.xlu0.b32.cont [4/16] %v1488, 128
    %1505 = vxpose.xlu0.b32.cont [5/16] %v1489, 128
    %1506 = vxpose.xlu0.b32.cont [6/16] %v1490, 128
    %1507 = vxpose.xlu0.b32.cont [7/16] %v1491, 128
    %1508 = vxpose.xlu0.b32.cont [8/16] %v1492, 128
    %1509 = vxpose.xlu0.b32.cont [9/16] %v1493, 128
    %1510 = vxpose.xlu0.b32.cont [10/16] %v1494, 128
    %1511 = vxpose.xlu0.b32.cont [11/16] %v1495, 128
    %1512 = vxpose.xlu0.b32.cont [12/16] %v1496, 128
    %1513 = vxpose.xlu0.b32.cont [13/16] %v1497, 128
    %1514 = vxpose.xlu0.b32.cont [14/16] %v1498, 128
    %1515 = vxpose.xlu0.b32.cont [15/16] %v1499, 128
    %1516 = vxpose.xlu0.b32.end [16/16] %v1500, 128
    %v1517 = vpop.trf.xlu0
    %v1518 = vpop.trf.xlu0
    %v1519 = vpop.trf.xlu0
    %v1520 = vpop.trf.xlu0
    %v1521 = vpop.trf.xlu0
    %v1522 = vpop.trf.xlu0
    %v1523 = vpop.trf.xlu0
    %v1524 = vpop.trf.xlu0
    %v1525 = vpop.trf.xlu0
    %v1526 = vpop.trf.xlu0
    %v1527 = vpop.trf.xlu0
    %v1528 = vpop.trf.xlu0
    %v1529 = vpop.trf.xlu0
    %v1530 = vpop.trf.xlu0
    %v1531 = vpop.trf.xlu0
    %v1532 = vpop.trf.xlu0
    %1533 = vst [vmem:[#allocation2] sm:$0x1] %v1517
    // Predicated region
    $region14: #{tpu_custom_call.1} parent=1 // pred_check
      _
    $region15: #{tpu_custom_call.1} parent=1 // pred_check_branch
      %1535 = sbr.rel (0) target = $region17
    $region16: #{tpu_custom_call.1} parent=1 // pred_region
      %s1537 = ssub.s32 16, 16
      %1538 = vsyncadd [#allocation3], %s1537
      %s1540 = sshll.u32 [#allocation2], 4
      %s1541 = int_to_ptr.vmem [resolvable:$true] %s1540
      %1543 = dma.vmem_to_hbm [thread:$0]  %s1541, 16, %s3, [#allocation3]
    $region17: #{tpu_custom_call.1} parent=1 // pred_fallthru
      _
    // Predicated region
    $region18: #{tpu_custom_call.1} parent=1 // pred_check
      _
    $region19: #{tpu_custom_call.1} parent=1 // pred_check_branch
      %1545 = sbr.rel (0) target = $region21
    $region20: #{tpu_custom_call.1} parent=1 // pred_region
      %1546 = dma.done [#allocation3], 16
    $region21: #{tpu_custom_call.1} parent=1 // pred_fallthru
      _
    %1547 = vsyncpa [#allocation3], 1

</llo_original>
